<compile_context>
chip_gen: v6e
topology: v6e:2x2x1
jax: 0.10.0
libtpu: 0.0.40
codegen_flags: <defaults>
</compile_context>

<pallas_src>
import functools

import jax
import jax.numpy as jnp
from jax import lax
from jax.experimental import pallas as pl
from jax.experimental.pallas import tpu as pltpu


# ----------------------------- tiled linear (matmul) kernel -----------------------------

def _matmul_kernel(x_ref, w_ref, o_ref, acc_ref):
    @pl.when(pl.program_id(2) == 0)
    def _():
        acc_ref[...] = jnp.zeros_like(acc_ref)

    acc_ref[...] += jnp.dot(x_ref[...], w_ref[...], preferred_element_type=jnp.float32)

    @pl.when(pl.program_id(2) == pl.num_programs(2) - 1)
    def _():
        o_ref[...] = acc_ref[...].astype(o_ref.dtype)


def _tile(dim, target):
    # Use the MXU-aligned target tile when it divides the dim; otherwise fall back to the
    # full extent (small / misaligned dims become a single block, which is always legal).
    return target if dim % target == 0 else dim


def linear(x2d, w, *, tm=256, tn=256, tk=512):
    """x2d: (R, IN); w: (IN, OUT) (torch Linear weight transposed). No bias."""
    # Tile targets sized for v6e/v7x (2x256x256 MXU); on v5e prefer 128-aligned tiles.
    # Tiles are small enough (<~3 MiB double-buffered) to fit v7x's 64 MiB VMEM easily.
    R, IN = x2d.shape
    OUT = w.shape[1]
    tm, tn, tk = _tile(R, tm), _tile(OUT, tn), _tile(IN, tk)
    grid = (R // tm, OUT // tn, IN // tk)
    return pl.pallas_call(
        _matmul_kernel,
        out_shape=jax.ShapeDtypeStruct((R, OUT), x2d.dtype),
        grid=grid,
        in_specs=[
            pl.BlockSpec((tm, tk), lambda i, j, k: (i, k)),
            pl.BlockSpec((tk, tn), lambda i, j, k: (k, j)),
        ],
        out_specs=pl.BlockSpec((tm, tn), lambda i, j, k: (i, j)),
        scratch_shapes=[pltpu.VMEM((tm, tn), jnp.float32)],
        compiler_params=pltpu.CompilerParams(
            dimension_semantics=("parallel", "parallel", "arbitrary")),
        cost_estimate=pl.CostEstimate(
            flops=2 * R * IN * OUT,
            transcendentals=0,
            bytes_accessed=(R * IN + IN * OUT + R * OUT) * x2d.dtype.itemsize),
    )(x2d, w)


# ------------------- fused flash attention + output-projection kernel -------------------

def _flash_attn_kernel(q_ref, kv_ref, wo_ref, bo_ref, o_ref,
                       m_sc, l_sc, acc_sc, *, heads, dim_head, scale):
    # Blocks:
    #   q_ref  (1, tn, inner)         kv_ref (1, tkv, 2*inner)  packed [k | v]
    #   wo_ref (inner, Dq)            bo_ref (1, Dq)
    #   o_ref  (1, tn, Dq)
    # Scratch (persists across the KV grid axis):
    #   m_sc / l_sc : (heads, tn, 1) f32     acc_sc : (heads, tn, dim_head) f32
    inner = heads * dim_head
    j = pl.program_id(2)

    @pl.when(j == 0)
    def _():
        m_sc[...] = jnp.full_like(m_sc, -jnp.inf)
        l_sc[...] = jnp.zeros_like(l_sc)
        acc_sc[...] = jnp.zeros_like(acc_sc)

    # Fold the scale into q once per tile (N*inner elems instead of N*M).
    q_all = q_ref[0] * scale          # (tn, inner), native dtype
    kv_all = kv_ref[0]                # (tkv, 2*inner), native dtype

    for h in range(heads):            # static unroll over heads
        lo = h * dim_head
        qh = q_all[:, lo:lo + dim_head]                        # (tn, D)
        kh = kv_all[:, lo:lo + dim_head]                       # (tkv, D)
        vh = kv_all[:, inner + lo:inner + lo + dim_head]       # (tkv, D)

        # QK^T with contraction on the last dim of both operands (no materialized k.T).
        s = lax.dot_general(qh, kh, (((1,), (1,)), ((), ())),
                            preferred_element_type=jnp.float32)    # (tn, tkv)

        m_prev = m_sc[h]
        m_new = jnp.maximum(m_prev, jnp.max(s, axis=-1, keepdims=True))
        alpha = jnp.exp(m_prev - m_new)
        p = jnp.exp(s - m_new)
        l_sc[h] = alpha * l_sc[h] + jnp.sum(p, axis=-1, keepdims=True)
        acc_sc[h] = alpha * acc_sc[h] + jnp.dot(
            p.astype(vh.dtype), vh, preferred_element_type=jnp.float32)
        m_sc[h] = m_new

    @pl.when(j == pl.num_programs(2) - 1)
    def _():
        tn, dq = o_ref.shape[1], o_ref.shape[2]
        # Fused output projection: per-head (tn, D) @ (D, Dq) accumulated in f32 + bias.
        out = jnp.broadcast_to(bo_ref[...].astype(jnp.float32), (tn, dq))
        for h in range(heads):
            lo = h * dim_head
            oh = acc_sc[h] * pl.reciprocal(l_sc[h], approx=True)   # (tn, D) f32
            out = out + jnp.dot(oh.astype(wo_ref.dtype), wo_ref[lo:lo + dim_head, :],
                                preferred_element_type=jnp.float32)
        o_ref[0] = out.astype(o_ref.dtype)


def flash_attention(q, kv, wo, bo, *, heads, dim_head, scale,
                    tn_target=256, tkv_target=512):
    """q: (B, N, inner); kv: (B, M, 2*inner) packed [k | v]; wo: (inner, Dq); bo: (1, Dq)."""
    B, N, inner = q.shape
    M = kv.shape[1]
    Dq = wo.shape[1]
    tn = _tile(N, tn_target)
    tkv = _tile(M, tkv_target)
    grid = (B, N // tn, M // tkv)
    kernel = functools.partial(_flash_attn_kernel, heads=heads,
                               dim_head=dim_head, scale=scale)
    itemsize = q.dtype.itemsize
    return pl.pallas_call(
        kernel,
        out_shape=jax.ShapeDtypeStruct((B, N, Dq), q.dtype),
        grid=grid,
        in_specs=[
            pl.BlockSpec((1, tn, inner), lambda b, i, j: (b, i, 0)),
            pl.BlockSpec((1, tkv, 2 * inner), lambda b, i, j: (b, j, 0)),
            pl.BlockSpec((inner, Dq), lambda b, i, j: (0, 0)),
            pl.BlockSpec((1, Dq), lambda b, i, j: (0, 0)),
        ],
        out_specs=pl.BlockSpec((1, tn, Dq), lambda b, i, j: (b, i, 0)),
        scratch_shapes=[
            pltpu.VMEM((heads, tn, 1), jnp.float32),         # running max
            pltpu.VMEM((heads, tn, 1), jnp.float32),         # running sum
            pltpu.VMEM((heads, tn, dim_head), jnp.float32),  # running output accumulator
        ],
        compiler_params=pltpu.CompilerParams(
            dimension_semantics=("parallel", "parallel", "arbitrary")),
        cost_estimate=pl.CostEstimate(
            flops=4 * B * heads * N * M * dim_head + 2 * B * N * inner * Dq,
            transcendentals=B * heads * N * M,
            bytes_accessed=(q.size + kv.size + wo.size + bo.size + B * N * Dq) * itemsize),
    )(q, kv, wo, bo)


# ----------------------------- CrossAttention forward -----------------------------

def cross_attention_forward(params, x, context=None, *, heads, dim_head):
    """x: (B, N, query_dim); context: (B, M, context_dim) or None (self-attention)."""
    B, N, Dq = x.shape
    inner = heads * dim_head
    scale = dim_head ** (-0.5)

    if context is None:
        # Self-attention: fuse q/k/v into one projection (single read of x).
        w_qkv = jnp.concatenate([params["wq"], params["wk"], params["wv"]], axis=1)
        qkv = linear(x.reshape(B * N, Dq), w_qkv).reshape(B, N, 3 * inner)
        q = qkv[..., :inner]
        kv = qkv[..., inner:]
    else:
        M, Dc = context.shape[1], context.shape[2]
        q = linear(x.reshape(B * N, Dq), params["wq"]).reshape(B, N, inner)
        # Fuse k and v into one projection (single read of the context).
        w_kv = jnp.concatenate([params["wk"], params["wv"]], axis=1)
        kv = linear(context.reshape(B * M, Dc), w_kv).reshape(B, M, 2 * inner)

    bo = params["bo"].reshape(1, Dq)
    # Output projection (to_out Linear) is fused into the attention kernel epilogue.
    # Dropout(p=0.0) is identity at inference -> omitted.
    return flash_attention(q, kv, params["wo"], bo,
                           heads=heads, dim_head=dim_head, scale=scale)


# ----------------------------- reference (plain JAX) -----------------------------

def reference_forward(params, x, context=None, *, heads, dim_head):
    B, N, Dq = x.shape
    ctx = x if context is None else context
    M = ctx.shape[1]
    inner = heads * dim_head
    scale = dim_head ** (-0.5)
    q = x @ params["wq"]
    k = ctx @ params["wk"]
    v = ctx @ params["wv"]
    qh = q.reshape(B, N, heads, dim_head).transpose(0, 2, 1, 3)
    kh = k.reshape(B, M, heads, dim_head).transpose(0, 2, 1, 3)
    vh = v.reshape(B, M, heads, dim_head).transpose(0, 2, 1, 3)
    sim = jnp.einsum("bhid,bhjd->bhij", qh, kh) * scale
    attn = jax.nn.softmax(sim, axis=-1)
    out = jnp.einsum("bhij,bhjd->bhid", attn, vh)
    out = out.transpose(0, 2, 1, 3).reshape(B, N, inner)
    return out @ params["wo"] + params["bo"]


# ----------------------------- main -----------------------------

if __name__ == "__main__":
    # Small, module-consistent shapes.
    B, N, M = 2, 8, 8
    query_dim = 32
    context_dim = 32
    heads = 2
    dim_head = 16
    inner_dim = heads * dim_head

    key = jax.random.PRNGKey(0)
    kx, kc, k1, k2, k3, k4, k5 = jax.random.split(key, 7)

    x = jax.random.normal(kx, (B, N, query_dim), dtype=jnp.float32)
    context = jax.random.normal(kc, (B, M, context_dim), dtype=jnp.float32)

    # Weights stored as (in, out) == torch Linear weight transposed; deterministic init.
    params = {
        "wq": jax.random.normal(k1, (query_dim, inner_dim), dtype=jnp.float32) * 0.05,
        "wk": jax.random.normal(k2, (context_dim, inner_dim), dtype=jnp.float32) * 0.05,
        "wv": jax.random.normal(k3, (context_dim, inner_dim), dtype=jnp.float32) * 0.05,
        "wo": jax.random.normal(k4, (inner_dim, query_dim), dtype=jnp.float32) * 0.05,
        "bo": jax.random.normal(k5, (query_dim,), dtype=jnp.float32) * 0.05,
    }

    fwd = jax.jit(functools.partial(cross_attention_forward,
                                    heads=heads, dim_head=dim_head))
    out = jax.block_until_ready(fwd(params, x, context))

    ref = reference_forward(params, x, context, heads=heads, dim_head=dim_head)
    assert out.shape == (B, N, query_dim)
    # Approx (EUP) reciprocal in the softmax normalization -> slightly looser tolerance.
    assert jnp.allclose(out, ref, atol=1e-2, rtol=1e-2), "mismatch vs JAX reference"

    print("KERNEL_OK")
</pallas_src>

<mosaic_0001>
module attributes {stable_mosaic.version = 11 : i64} {
  func.func @_matmul_kernel(%arg0: i32, %arg1: i32, %arg2: i32, %arg3: memref<16x32xf32, #tpu.memory_space<vmem>>, %arg4: memref<32x64xf32, #tpu.memory_space<vmem>>, %arg5: memref<16x64xf32, #tpu.memory_space<vmem>>, %arg6: memref<16x64xf32, #tpu.memory_space<vmem>>) attributes {dimension_semantics = [#tpu.dimension_semantics<parallel>, #tpu.dimension_semantics<parallel>, #tpu.dimension_semantics<arbitrary>], iteration_bounds = array<i64: 1, 1, 1>, scalar_prefetch = 0 : i64, scratch_operands = 1 : i64, tpu.core_type = #tpu.core_type<tc>, window_params = [{transform_indices = @transform_0, window_bounds = array<i64: 16, 32>}, {transform_indices = @transform_1, window_bounds = array<i64: 32, 64>}, {transform_indices = @transform_2, window_bounds = array<i64: 16, 64>}]} {
    %c0_i32 = arith.constant 0 : i32
    %0 = arith.cmpi eq, %arg2, %c0_i32 : i32
    %1 = arith.extui %0 : i1 to i32
    %c0_i32_0 = arith.constant 0 : i32
    %2 = arith.cmpi ne, %1, %c0_i32_0 : i32
    scf.if %2 {
      %cst_10 = arith.constant 0.000000e+00 : f32
      %12 = vector.broadcast %cst_10 : f32 to vector<16x64xf32>
      %c0_11 = arith.constant 0 : index
      %c0_12 = arith.constant 0 : index
      %13 = vector.load %arg6[%c0_11, %c0_12] : memref<16x64xf32, #tpu.memory_space<vmem>>, vector<16x64xf32>
      tpu.vector_store %arg6[%c0_11, %c0_12], %12 {strides = array<i32>} : memref<16x64xf32, #tpu.memory_space<vmem>>, vector<16x64xf32>,
    } else {
    }
    %c0 = arith.constant 0 : index
    %c0_1 = arith.constant 0 : index
    %3 = vector.load %arg6[%c0, %c0_1] : memref<16x64xf32, #tpu.memory_space<vmem>>, vector<16x64xf32>
    %c0_2 = arith.constant 0 : index
    %c0_3 = arith.constant 0 : index
    %4 = vector.load %arg3[%c0_2, %c0_3] : memref<16x32xf32, #tpu.memory_space<vmem>>, vector<16x32xf32>
    %c0_4 = arith.constant 0 : index
    %c0_5 = arith.constant 0 : index
    %5 = vector.load %arg4[%c0_4, %c0_5] : memref<32x64xf32, #tpu.memory_space<vmem>>, vector<32x64xf32>
    %cst = arith.constant dense<0.000000e+00> : vector<16x64xf32>
    %6 = tpu.matmul %4, %5, %cst {dimension_numbers = #tpu.dot_dimension_numbers<[1], [0], [0], [1], [0, 0, 1, 1], [], []>} : vector<16x32xf32>, vector<32x64xf32>, vector<16x64xf32> -> vector<16x64xf32>
    %7 = arith.addf %3, %6 : vector<16x64xf32>
    %c0_6 = arith.constant 0 : index
    %c0_7 = arith.constant 0 : index
    %8 = vector.load %arg6[%c0_6, %c0_7] : memref<16x64xf32, #tpu.memory_space<vmem>>, vector<16x64xf32>
    tpu.vector_store %arg6[%c0_6, %c0_7], %7 {strides = array<i32>} : memref<16x64xf32, #tpu.memory_space<vmem>>, vector<16x64xf32>,
    %c0_i32_8 = arith.constant 0 : i32
    %9 = arith.cmpi eq, %arg2, %c0_i32_8 : i32
    %10 = arith.extui %9 : i1 to i32
    %c0_i32_9 = arith.constant 0 : i32
    %11 = arith.cmpi ne, %10, %c0_i32_9 : i32
    scf.if %11 {
      %c0_10 = arith.constant 0 : index
      %c0_11 = arith.constant 0 : index
      %12 = vector.load %arg6[%c0_10, %c0_11] : memref<16x64xf32, #tpu.memory_space<vmem>>, vector<16x64xf32>
      %c0_12 = arith.constant 0 : index
      %c0_13 = arith.constant 0 : index
      %13 = vector.load %arg5[%c0_12, %c0_13] : memref<16x64xf32, #tpu.memory_space<vmem>>, vector<16x64xf32>
      tpu.vector_store %arg5[%c0_12, %c0_13], %12 {strides = array<i32>} : memref<16x64xf32, #tpu.memory_space<vmem>>, vector<16x64xf32>,
    } else {
    }
    return
  }
  func.func @transform_0(%arg0: i32, %arg1: i32, %arg2: i32) -> (i32, i32) {
    %c0_i32 = arith.constant 0 : i32
    return %arg0, %arg2 : i32, i32
  }
  func.func @transform_1(%arg0: i32, %arg1: i32, %arg2: i32) -> (i32, i32) {
    %c0_i32 = arith.constant 0 : i32
    return %arg2, %arg1 : i32, i32
  }
  func.func @transform_2(%arg0: i32, %arg1: i32, %arg2: i32) -> (i32, i32) {
    %c0_i32 = arith.constant 0 : i32
    return %arg0, %arg1 : i32, i32
  }
}

module attributes {stable_mosaic.version = 11 : i64} {
  func.func @_flash_attn_kernel(%arg0: i32, %arg1: i32, %arg2: i32, %arg3: memref<1x8x32xf32, #tpu.memory_space<vmem>>, %arg4: memref<1x8x64xf32, #tpu.memory_space<vmem>>, %arg5: memref<32x32xf32, #tpu.memory_space<vmem>>, %arg6: memref<1x32xf32, #tpu.memory_space<vmem>>, %arg7: memref<1x8x32xf32, #tpu.memory_space<vmem>>, %arg8: memref<2x8x1xf32, #tpu.memory_space<vmem>>, %arg9: memref<2x8x1xf32, #tpu.memory_space<vmem>>, %arg10: memref<2x8x16xf32, #tpu.memory_space<vmem>>) attributes {dimension_semantics = [#tpu.dimension_semantics<parallel>, #tpu.dimension_semantics<parallel>, #tpu.dimension_semantics<arbitrary>], iteration_bounds = array<i64: 2, 1, 1>, scalar_prefetch = 0 : i64, scratch_operands = 3 : i64, tpu.core_type = #tpu.core_type<tc>, window_params = [{transform_indices = @transform_0, window_bounds = array<i64: 1, 8, 32>}, {transform_indices = @transform_1, window_bounds = array<i64: 1, 8, 64>}, {pipeline_mode = #tpu.pipeline_mode<synchronous>, transform_indices = @transform_2, window_bounds = array<i64: 32, 32>}, {pipeline_mode = #tpu.pipeline_mode<synchronous>, transform_indices = @transform_3, window_bounds = array<i64: 1, 32>}, {transform_indices = @transform_4, window_bounds = array<i64: 1, 8, 32>}]} {
    %c0_i32 = arith.constant 0 : i32
    %0 = arith.cmpi eq, %arg2, %c0_i32 : i32
    %1 = arith.extui %0 : i1 to i32
    %c0_i32_0 = arith.constant 0 : i32
    %2 = arith.cmpi ne, %1, %c0_i32_0 : i32
    scf.if %2 {
      %cst_51 = arith.constant 0xFF800000 : f32
      %82 = vector.broadcast %cst_51 : f32 to vector<2x8x1xf32>
      %c0_52 = arith.constant 0 : index
      %c0_53 = arith.constant 0 : index
      %c0_54 = arith.constant 0 : index
      %83 = vector.load %arg8[%c0_52, %c0_53, %c0_54] : memref<2x8x1xf32, #tpu.memory_space<vmem>>, vector<2x8x1xf32>
      tpu.vector_store %arg8[%c0_52, %c0_53, %c0_54], %82 {strides = array<i32>} : memref<2x8x1xf32, #tpu.memory_space<vmem>>, vector<2x8x1xf32>,
      %cst_55 = arith.constant 0.000000e+00 : f32
      %84 = vector.broadcast %cst_55 : f32 to vector<2x8x1xf32>
      %c0_56 = arith.constant 0 : index
      %c0_57 = arith.constant 0 : index
      %c0_58 = arith.constant 0 : index
      %85 = vector.load %arg9[%c0_56, %c0_57, %c0_58] : memref<2x8x1xf32, #tpu.memory_space<vmem>>, vector<2x8x1xf32>
      tpu.vector_store %arg9[%c0_56, %c0_57, %c0_58], %84 {strides = array<i32>} : memref<2x8x1xf32, #tpu.memory_space<vmem>>, vector<2x8x1xf32>,
      %cst_59 = arith.constant 0.000000e+00 : f32
      %86 = vector.broadcast %cst_59 : f32 to vector<2x8x16xf32>
      %c0_60 = arith.constant 0 : index
      %c0_61 = arith.constant 0 : index
      %c0_62 = arith.constant 0 : index
      %87 = vector.load %arg10[%c0_60, %c0_61, %c0_62] : memref<2x8x16xf32, #tpu.memory_space<vmem>>, vector<2x8x16xf32>
      tpu.vector_store %arg10[%c0_60, %c0_61, %c0_62], %86 {strides = array<i32>} : memref<2x8x16xf32, #tpu.memory_space<vmem>>, vector<2x8x16xf32>,
    } else {
    }
    %c0 = arith.constant 0 : index
    %c0_1 = arith.constant 0 : index
    %c0_2 = arith.constant 0 : index
    %3 = vector.load %arg3[%c0, %c0_1, %c0_2] : memref<1x8x32xf32, #tpu.memory_space<vmem>>, vector<1x8x32xf32>
    %4 = vector.shape_cast %3 : vector<1x8x32xf32> to vector<8x32xf32>
    %cst = arith.constant 2.500000e-01 : f32
    %5 = vector.broadcast %cst : f32 to vector<8x32xf32>
    %6 = arith.mulf %4, %5 : vector<8x32xf32>
    %c0_3 = arith.constant 0 : index
    %c0_4 = arith.constant 0 : index
    %c0_5 = arith.constant 0 : index
    %7 = vector.load %arg4[%c0_3, %c0_4, %c0_5] : memref<1x8x64xf32, #tpu.memory_space<vmem>>, vector<1x8x64xf32>
    %8 = vector.shape_cast %7 : vector<1x8x64xf32> to vector<8x64xf32>
    %9 = vector.extract_strided_slice %6 {offsets = [0, 0], sizes = [8, 16], strides = [1, 1]} : vector<8x32xf32> to vector<8x16xf32>
    %10 = vector.extract_strided_slice %8 {offsets = [0, 0], sizes = [8, 16], strides = [1, 1]} : vector<8x64xf32> to vector<8x16xf32>
    %11 = vector.extract_strided_slice %8 {offsets = [0, 32], sizes = [8, 16], strides = [1, 1]} : vector<8x64xf32> to vector<8x16xf32>
    %cst_6 = arith.constant dense<0.000000e+00> : vector<8x8xf32>
    %12 = tpu.matmul %9, %10, %cst_6 {dimension_numbers = #tpu.dot_dimension_numbers<[1], [1], [0], [0], [0, 0, 1, 0], [], []>} : vector<8x16xf32>, vector<8x16xf32>, vector<8x8xf32> -> vector<8x8xf32>
    %c0_7 = arith.constant 0 : index
    %c0_8 = arith.constant 0 : index
    %c0_9 = arith.constant 0 : index
    %13 = vector.load %arg8[%c0_7, %c0_8, %c0_9] : memref<2x8x1xf32, #tpu.memory_space<vmem>>, vector<1x8x1xf32>
    %14 = vector.shape_cast %13 : vector<1x8x1xf32> to vector<8x1xf32>
    %cst_10 = arith.constant dense<0xFF800000> : vector<8xf32>
    %15 = vector.multi_reduction <maximumf>, %12, %cst_10 [1] : vector<8x8xf32> to vector<8xf32>
    %16 = vector.shape_cast %15 : vector<8xf32> to vector<8x1xf32>
    %17 = arith.maximumf %14, %16 : vector<8x1xf32>
    %18 = arith.subf %14, %17 : vector<8x1xf32>
    %19 = math.exp %18 : vector<8x1xf32>
    %20 = vector.broadcast %17 : vector<8x1xf32> to vector<8x8xf32>
    %21 = arith.subf %12, %20 : vector<8x8xf32>
    %22 = math.exp %21 : vector<8x8xf32>
    %c0_11 = arith.constant 0 : index
    %c0_12 = arith.constant 0 : index
    %c0_13 = arith.constant 0 : index
    %23 = vector.load %arg9[%c0_11, %c0_12, %c0_13] : memref<2x8x1xf32, #tpu.memory_space<vmem>>, vector<1x8x1xf32>
    %24 = vector.shape_cast %23 : vector<1x8x1xf32> to vector<8x1xf32>
    %25 = arith.mulf %19, %24 : vector<8x1xf32>
    %cst_14 = arith.constant dense<0.000000e+00> : vector<8xf32>
    %26 = vector.multi_reduction <add>, %22, %cst_14 [1] : vector<8x8xf32> to vector<8xf32>
    %27 = vector.shape_cast %26 : vector<8xf32> to vector<8x1xf32>
    %28 = arith.addf %25, %27 : vector<8x1xf32>
    %c0_15 = arith.constant 0 : index
    %c0_16 = arith.constant 0 : index
    %c0_17 = arith.constant 0 : index
    %29 = vector.load %arg9[%c0_15, %c0_16, %c0_17] : memref<2x8x1xf32, #tpu.memory_space<vmem>>, vector<1x8x1xf32>
    %30 = vector.shape_cast %29 : vector<1x8x1xf32> to vector<8x1xf32>
    %31 = vector.shape_cast %28 : vector<8x1xf32> to vector<1x8x1xf32>
    tpu.vector_store %arg9[%c0_15, %c0_16, %c0_17], %31 {strides = array<i32>} : memref<2x8x1xf32, #tpu.memory_space<vmem>>, vector<1x8x1xf32>,
    %c0_18 = arith.constant 0 : index
    %c0_19 = arith.constant 0 : index
    %c0_20 = arith.constant 0 : index
    %32 = vector.load %arg10[%c0_18, %c0_19, %c0_20] : memref<2x8x16xf32, #tpu.memory_space<vmem>>, vector<1x8x16xf32>
    %33 = vector.shape_cast %32 : vector<1x8x16xf32> to vector<8x16xf32>
    %34 = vector.broadcast %19 : vector<8x1xf32> to vector<8x16xf32>
    %35 = arith.mulf %34, %33 : vector<8x16xf32>
    %cst_21 = arith.constant dense<0.000000e+00> : vector<8x16xf32>
    %36 = tpu.matmul %22, %11, %cst_21 {dimension_numbers = #tpu.dot_dimension_numbers<[1], [0], [0], [1], [0, 0, 1, 1], [], []>} : vector<8x8xf32>, vector<8x16xf32>, vector<8x16xf32> -> vector<8x16xf32>
    %37 = arith.addf %35, %36 : vector<8x16xf32>
    %c0_22 = arith.constant 0 : index
    %c0_23 = arith.constant 0 : index
    %c0_24 = arith.constant 0 : index
    %38 = vector.load %arg10[%c0_22, %c0_23, %c0_24] : memref<2x8x16xf32, #tpu.memory_space<vmem>>, vector<1x8x16xf32>
    %39 = vector.shape_cast %38 : vector<1x8x16xf32> to vector<8x16xf32>
    %40 = vector.shape_cast %37 : vector<8x16xf32> to vector<1x8x16xf32>
    tpu.vector_store %arg10[%c0_22, %c0_23, %c0_24], %40 {strides = array<i32>} : memref<2x8x16xf32, #tpu.memory_space<vmem>>, vector<1x8x16xf32>,
    %c0_25 = arith.constant 0 : index
    %c0_26 = arith.constant 0 : index
    %c0_27 = arith.constant 0 : index
    %41 = vector.load %arg8[%c0_25, %c0_26, %c0_27] : memref<2x8x1xf32, #tpu.memory_space<vmem>>, vector<1x8x1xf32>
    %42 = vector.shape_cast %41 : vector<1x8x1xf32> to vector<8x1xf32>
    %43 = vector.shape_cast %17 : vector<8x1xf32> to vector<1x8x1xf32>
    tpu.vector_store %arg8[%c0_25, %c0_26, %c0_27], %43 {strides = array<i32>} : memref<2x8x1xf32, #tpu.memory_space<vmem>>, vector<1x8x1xf32>,
    %44 = vector.extract_strided_slice %6 {offsets = [0, 16], sizes = [8, 16], strides = [1, 1]} : vector<8x32xf32> to vector<8x16xf32>
    %45 = vector.extract_strided_slice %8 {offsets = [0, 16], sizes = [8, 16], strides = [1, 1]} : vector<8x64xf32> to vector<8x16xf32>
    %46 = vector.extract_strided_slice %8 {offsets = [0, 48], sizes = [8, 16], strides = [1, 1]} : vector<8x64xf32> to vector<8x16xf32>
    %cst_28 = arith.constant dense<0.000000e+00> : vector<8x8xf32>
    %47 = tpu.matmul %44, %45, %cst_28 {dimension_numbers = #tpu.dot_dimension_numbers<[1], [1], [0], [0], [0, 0, 1, 0], [], []>} : vector<8x16xf32>, vector<8x16xf32>, vector<8x8xf32> -> vector<8x8xf32>
    %c1 = arith.constant 1 : index
    %c0_29 = arith.constant 0 : index
    %c0_30 = arith.constant 0 : index
    %48 = vector.load %arg8[%c1, %c0_29, %c0_30] : memref<2x8x1xf32, #tpu.memory_space<vmem>>, vector<1x8x1xf32>
    %49 = vector.shape_cast %48 : vector<1x8x1xf32> to vector<8x1xf32>
    %cst_31 = arith.constant dense<0xFF800000> : vector<8xf32>
    %50 = vector.multi_reduction <maximumf>, %47, %cst_31 [1] : vector<8x8xf32> to vector<8xf32>
    %51 = vector.shape_cast %50 : vector<8xf32> to vector<8x1xf32>
    %52 = arith.maximumf %49, %51 : vector<8x1xf32>
    %53 = arith.subf %49, %52 : vector<8x1xf32>
    %54 = math.exp %53 : vector<8x1xf32>
    %55 = vector.broadcast %52 : vector<8x1xf32> to vector<8x8xf32>
    %56 = arith.subf %47, %55 : vector<8x8xf32>
    %57 = math.exp %56 : vector<8x8xf32>
    %c1_32 = arith.constant 1 : index
    %c0_33 = arith.constant 0 : index
    %c0_34 = arith.constant 0 : index
    %58 = vector.load %arg9[%c1_32, %c0_33, %c0_34] : memref<2x8x1xf32, #tpu.memory_space<vmem>>, vector<1x8x1xf32>
    %59 = vector.shape_cast %58 : vector<1x8x1xf32> to vector<8x1xf32>
    %60 = arith.mulf %54, %59 : vector<8x1xf32>
    %cst_35 = arith.constant dense<0.000000e+00> : vector<8xf32>
    %61 = vector.multi_reduction <add>, %57, %cst_35 [1] : vector<8x8xf32> to vector<8xf32>
    %62 = vector.shape_cast %61 : vector<8xf32> to vector<8x1xf32>
    %63 = arith.addf %60, %62 : vector<8x1xf32>
    %c1_36 = arith.constant 1 : index
    %c0_37 = arith.constant 0 : index
    %c0_38 = arith.constant 0 : index
    %64 = vector.load %arg9[%c1_36, %c0_37, %c0_38] : memref<2x8x1xf32, #tpu.memory_space<vmem>>, vector<1x8x1xf32>
    %65 = vector.shape_cast %64 : vector<1x8x1xf32> to vector<8x1xf32>
    %66 = vector.shape_cast %63 : vector<8x1xf32> to vector<1x8x1xf32>
    tpu.vector_store %arg9[%c1_36, %c0_37, %c0_38], %66 {strides = array<i32>} : memref<2x8x1xf32, #tpu.memory_space<vmem>>, vector<1x8x1xf32>,
    %c1_39 = arith.constant 1 : index
    %c0_40 = arith.constant 0 : index
    %c0_41 = arith.constant 0 : index
    %67 = vector.load %arg10[%c1_39, %c0_40, %c0_41] : memref<2x8x16xf32, #tpu.memory_space<vmem>>, vector<1x8x16xf32>
    %68 = vector.shape_cast %67 : vector<1x8x16xf32> to vector<8x16xf32>
    %69 = vector.broadcast %54 : vector<8x1xf32> to vector<8x16xf32>
    %70 = arith.mulf %69, %68 : vector<8x16xf32>
    %cst_42 = arith.constant dense<0.000000e+00> : vector<8x16xf32>
    %71 = tpu.matmul %57, %46, %cst_42 {dimension_numbers = #tpu.dot_dimension_numbers<[1], [0], [0], [1], [0, 0, 1, 1], [], []>} : vector<8x8xf32>, vector<8x16xf32>, vector<8x16xf32> -> vector<8x16xf32>
    %72 = arith.addf %70, %71 : vector<8x16xf32>
    %c1_43 = arith.constant 1 : index
    %c0_44 = arith.constant 0 : index
    %c0_45 = arith.constant 0 : index
    %73 = vector.load %arg10[%c1_43, %c0_44, %c0_45] : memref<2x8x16xf32, #tpu.memory_space<vmem>>, vector<1x8x16xf32>
    %74 = vector.shape_cast %73 : vector<1x8x16xf32> to vector<8x16xf32>
    %75 = vector.shape_cast %72 : vector<8x16xf32> to vector<1x8x16xf32>
    tpu.vector_store %arg10[%c1_43, %c0_44, %c0_45], %75 {strides = array<i32>} : memref<2x8x16xf32, #tpu.memory_space<vmem>>, vector<1x8x16xf32>,
    %c1_46 = arith.constant 1 : index
    %c0_47 = arith.constant 0 : index
    %c0_48 = arith.constant 0 : index
    %76 = vector.load %arg8[%c1_46, %c0_47, %c0_48] : memref<2x8x1xf32, #tpu.memory_space<vmem>>, vector<1x8x1xf32>
    %77 = vector.shape_cast %76 : vector<1x8x1xf32> to vector<8x1xf32>
    %78 = vector.shape_cast %52 : vector<8x1xf32> to vector<1x8x1xf32>
    tpu.vector_store %arg8[%c1_46, %c0_47, %c0_48], %78 {strides = array<i32>} : memref<2x8x1xf32, #tpu.memory_space<vmem>>, vector<1x8x1xf32>,
    %c0_i32_49 = arith.constant 0 : i32
    %79 = arith.cmpi eq, %arg2, %c0_i32_49 : i32
    %80 = arith.extui %79 : i1 to i32
    %c0_i32_50 = arith.constant 0 : i32
    %81 = arith.cmpi ne, %80, %c0_i32_50 : i32
    scf.if %81 {
      %c0_51 = arith.constant 0 : index
      %c0_52 = arith.constant 0 : index
      %82 = vector.load %arg6[%c0_51, %c0_52] : memref<1x32xf32, #tpu.memory_space<vmem>>, vector<1x32xf32>
      %83 = vector.shape_cast %82 : vector<1x32xf32> to vector<1x32xf32>
      %84 = vector.broadcast %83 : vector<1x32xf32> to vector<8x32xf32>
      %c0_53 = arith.constant 0 : index
      %c0_54 = arith.constant 0 : index
      %c0_55 = arith.constant 0 : index
      %85 = vector.load %arg10[%c0_53, %c0_54, %c0_55] : memref<2x8x16xf32, #tpu.memory_space<vmem>>, vector<1x8x16xf32>
      %86 = vector.shape_cast %85 : vector<1x8x16xf32> to vector<8x16xf32>
      %c0_56 = arith.constant 0 : index
      %c0_57 = arith.constant 0 : index
      %c0_58 = arith.constant 0 : index
      %87 = vector.load %arg9[%c0_56, %c0_57, %c0_58] : memref<2x8x1xf32, #tpu.memory_space<vmem>>, vector<1x8x1xf32>
      %88 = vector.shape_cast %87 : vector<1x8x1xf32> to vector<8x1xf32>
      %89 = tpu.reciprocal %88 {approx = true} : vector<8x1xf32> -> vector<8x1xf32>
      %90 = vector.broadcast %89 : vector<8x1xf32> to vector<8x16xf32>
      %91 = arith.mulf %86, %90 : vector<8x16xf32>
      %c0_59 = arith.constant 0 : index
      %c0_60 = arith.constant 0 : index
      %92 = vector.load %arg5[%c0_59, %c0_60] : memref<32x32xf32, #tpu.memory_space<vmem>>, vector<16x32xf32>
      %cst_61 = arith.constant dense<0.000000e+00> : vector<8x32xf32>
      %93 = tpu.matmul %91, %92, %cst_61 {dimension_numbers = #tpu.dot_dimension_numbers<[1], [0], [0], [1], [0, 0, 1, 1], [], []>} : vector<8x16xf32>, vector<16x32xf32>, vector<8x32xf32> -> vector<8x32xf32>
      %94 = arith.addf %84, %93 : vector<8x32xf32>
      %c1_62 = arith.constant 1 : index
      %c0_63 = arith.constant 0 : index
      %c0_64 = arith.constant 0 : index
      %95 = vector.load %arg10[%c1_62, %c0_63, %c0_64] : memref<2x8x16xf32, #tpu.memory_space<vmem>>, vector<1x8x16xf32>
      %96 = vector.shape_cast %95 : vector<1x8x16xf32> to vector<8x16xf32>
      %c1_65 = arith.constant 1 : index
      %c0_66 = arith.constant 0 : index
      %c0_67 = arith.constant 0 : index
      %97 = vector.load %arg9[%c1_65, %c0_66, %c0_67] : memref<2x8x1xf32, #tpu.memory_space<vmem>>, vector<1x8x1xf32>
      %98 = vector.shape_cast %97 : vector<1x8x1xf32> to vector<8x1xf32>
      %99 = tpu.reciprocal %98 {approx = true} : vector<8x1xf32> -> vector<8x1xf32>
      %100 = vector.broadcast %99 : vector<8x1xf32> to vector<8x16xf32>
      %101 = arith.mulf %96, %100 : vector<8x16xf32>
      %c16 = arith.constant 16 : index
      %c0_68 = arith.constant 0 : index
      %102 = vector.load %arg5[%c16, %c0_68] : memref<32x32xf32, #tpu.memory_space<vmem>>, vector<16x32xf32>
      %cst_69 = arith.constant dense<0.000000e+00> : vector<8x32xf32>
      %103 = tpu.matmul %101, %102, %cst_69 {dimension_numbers = #tpu.dot_dimension_numbers<[1], [0], [0], [1], [0, 0, 1, 1], [], []>} : vector<8x16xf32>, vector<16x32xf32>, vector<8x32xf32> -> vector<8x32xf32>
      %104 = arith.addf %94, %103 : vector<8x32xf32>
      %c0_70 = arith.constant 0 : index
      %c0_71 = arith.constant 0 : index
      %c0_72 = arith.constant 0 : index
      %105 = vector.load %arg7[%c0_70, %c0_71, %c0_72] : memref<1x8x32xf32, #tpu.memory_space<vmem>>, vector<1x8x32xf32>
      %106 = vector.shape_cast %105 : vector<1x8x32xf32> to vector<8x32xf32>
      %107 = vector.shape_cast %104 : vector<8x32xf32> to vector<1x8x32xf32>
      tpu.vector_store %arg7[%c0_70, %c0_71, %c0_72], %107 {strides = array<i32>} : memref<1x8x32xf32, #tpu.memory_space<vmem>>, vector<1x8x32xf32>,
    } else {
    }
    return
  }
  func.func @transform_0(%arg0: i32, %arg1: i32, %arg2: i32) -> (i32, i32, i32) {
    %c0_i32 = arith.constant 0 : i32
    %c0_i32_0 = arith.constant 0 : i32
    return %arg0, %arg1, %c0_i32 : i32, i32, i32
  }
  func.func @transform_1(%arg0: i32, %arg1: i32, %arg2: i32) -> (i32, i32, i32) {
    %c0_i32 = arith.constant 0 : i32
    %c0_i32_0 = arith.constant 0 : i32
    return %arg0, %arg2, %c0_i32 : i32, i32, i32
  }
  func.func @transform_2(%arg0: i32, %arg1: i32, %arg2: i32) -> (i32, i32) {
    %c0_i32 = arith.constant 0 : i32
    %c0_i32_0 = arith.constant 0 : i32
    %c0_i32_1 = arith.constant 0 : i32
    return %c0_i32, %c0_i32_0 : i32, i32
  }
  func.func @transform_3(%arg0: i32, %arg1: i32, %arg2: i32) -> (i32, i32) {
    %c0_i32 = arith.constant 0 : i32
    %c0_i32_0 = arith.constant 0 : i32
    %c0_i32_1 = arith.constant 0 : i32
    return %c0_i32, %c0_i32_0 : i32, i32
  }
  func.func @transform_4(%arg0: i32, %arg1: i32, %arg2: i32) -> (i32, i32, i32) {
    %c0_i32 = arith.constant 0 : i32
    %c0_i32_0 = arith.constant 0 : i32
    return %arg0, %arg1, %c0_i32 : i32, i32, i32
  }
}

module attributes {stable_mosaic.version = 11 : i64} {
  func.func @_matmul_kernel(%arg0: i32, %arg1: i32, %arg2: i32, %arg3: memref<16x32xf32, #tpu.memory_space<vmem>>, %arg4: memref<32x32xf32, #tpu.memory_space<vmem>>, %arg5: memref<16x32xf32, #tpu.memory_space<vmem>>, %arg6: memref<16x32xf32, #tpu.memory_space<vmem>>) attributes {dimension_semantics = [#tpu.dimension_semantics<parallel>, #tpu.dimension_semantics<parallel>, #tpu.dimension_semantics<arbitrary>], iteration_bounds = array<i64: 1, 1, 1>, scalar_prefetch = 0 : i64, scratch_operands = 1 : i64, tpu.core_type = #tpu.core_type<tc>, window_params = [{transform_indices = @transform_0, window_bounds = array<i64: 16, 32>}, {transform_indices = @transform_1, window_bounds = array<i64: 32, 32>}, {transform_indices = @transform_2, window_bounds = array<i64: 16, 32>}]} {
    %c0_i32 = arith.constant 0 : i32
    %0 = arith.cmpi eq, %arg2, %c0_i32 : i32
    %1 = arith.extui %0 : i1 to i32
    %c0_i32_0 = arith.constant 0 : i32
    %2 = arith.cmpi ne, %1, %c0_i32_0 : i32
    scf.if %2 {
      %cst_10 = arith.constant 0.000000e+00 : f32
      %12 = vector.broadcast %cst_10 : f32 to vector<16x32xf32>
      %c0_11 = arith.constant 0 : index
      %c0_12 = arith.constant 0 : index
      %13 = vector.load %arg6[%c0_11, %c0_12] : memref<16x32xf32, #tpu.memory_space<vmem>>, vector<16x32xf32>
      tpu.vector_store %arg6[%c0_11, %c0_12], %12 {strides = array<i32>} : memref<16x32xf32, #tpu.memory_space<vmem>>, vector<16x32xf32>,
    } else {
    }
    %c0 = arith.constant 0 : index
    %c0_1 = arith.constant 0 : index
    %3 = vector.load %arg6[%c0, %c0_1] : memref<16x32xf32, #tpu.memory_space<vmem>>, vector<16x32xf32>
    %c0_2 = arith.constant 0 : index
    %c0_3 = arith.constant 0 : index
    %4 = vector.load %arg3[%c0_2, %c0_3] : memref<16x32xf32, #tpu.memory_space<vmem>>, vector<16x32xf32>
    %c0_4 = arith.constant 0 : index
    %c0_5 = arith.constant 0 : index
    %5 = vector.load %arg4[%c0_4, %c0_5] : memref<32x32xf32, #tpu.memory_space<vmem>>, vector<32x32xf32>
    %cst = arith.constant dense<0.000000e+00> : vector<16x32xf32>
    %6 = tpu.matmul %4, %5, %cst {dimension_numbers = #tpu.dot_dimension_numbers<[1], [0], [0], [1], [0, 0, 1, 1], [], []>} : vector<16x32xf32>, vector<32x32xf32>, vector<16x32xf32> -> vector<16x32xf32>
    %7 = arith.addf %3, %6 : vector<16x32xf32>
    %c0_6 = arith.constant 0 : index
    %c0_7 = arith.constant 0 : index
    %8 = vector.load %arg6[%c0_6, %c0_7] : memref<16x32xf32, #tpu.memory_space<vmem>>, vector<16x32xf32>
    tpu.vector_store %arg6[%c0_6, %c0_7], %7 {strides = array<i32>} : memref<16x32xf32, #tpu.memory_space<vmem>>, vector<16x32xf32>,
    %c0_i32_8 = arith.constant 0 : i32
    %9 = arith.cmpi eq, %arg2, %c0_i32_8 : i32
    %10 = arith.extui %9 : i1 to i32
    %c0_i32_9 = arith.constant 0 : i32
    %11 = arith.cmpi ne, %10, %c0_i32_9 : i32
    scf.if %11 {
      %c0_10 = arith.constant 0 : index
      %c0_11 = arith.constant 0 : index
      %12 = vector.load %arg6[%c0_10, %c0_11] : memref<16x32xf32, #tpu.memory_space<vmem>>, vector<16x32xf32>
      %c0_12 = arith.constant 0 : index
      %c0_13 = arith.constant 0 : index
      %13 = vector.load %arg5[%c0_12, %c0_13] : memref<16x32xf32, #tpu.memory_space<vmem>>, vector<16x32xf32>
      tpu.vector_store %arg5[%c0_12, %c0_13], %12 {strides = array<i32>} : memref<16x32xf32, #tpu.memory_space<vmem>>, vector<16x32xf32>,
    } else {
    }
    return
  }
  func.func @transform_0(%arg0: i32, %arg1: i32, %arg2: i32) -> (i32, i32) {
    %c0_i32 = arith.constant 0 : i32
    return %arg0, %arg2 : i32, i32
  }
  func.func @transform_1(%arg0: i32, %arg1: i32, %arg2: i32) -> (i32, i32) {
    %c0_i32 = arith.constant 0 : i32
    return %arg2, %arg1 : i32, i32
  }
  func.func @transform_2(%arg0: i32, %arg1: i32, %arg2: i32) -> (i32, i32) {
    %c0_i32 = arith.constant 0 : i32
    return %arg0, %arg1 : i32, i32
  }
}

</mosaic_0001>

<llo_original>
// kernel: cross_attention_forward.3
$region0: #{cross_attention_forward.3}
  #allocation0 [shape = 'u32[]', space=smem, size = 0x4, offset = 0x4, fixed_abs, tag = 'smem constant byte address 0x4 - core index']
  #allocation1 [shape = 'u32[144,128]{1,0:T(1,128)}', space=vmem, size = 0x12000, scoped, tag = 'internal scratch']
  #allocation2 [shape = 'f32[16,32]{1,0:T(8,128)}', space=vmem, size = 0x2000, scoped, tag = 'scratch operand']
  %s0 = inlined_call_operand.vmem [shape: f32[16,32], index: 0, kind: input, shape index: {}]
  %s1 = inlined_call_operand.vmem [shape: f32[32,32], index: 1, kind: input, shape index: {}]
  %s2 = inlined_call_operand.vmem [shape: f32[16,32], index: 2, kind: output, shape index: {}]
  %s3 = sld [smem:[#allocation0]]
  $region26: #{cross_attention_forward.3} parent=0
    _
  %s5 = ssub.s32 1, %s3
  %s6 = scalar_select 0, %s5, %s3
  // Predicated region
  $region2: #{cross_attention_forward.3} parent=0 // pred_check
    _
  $region3: #{cross_attention_forward.3} parent=0 // pred_check_branch
    %8 = sbr.rel (0) target = $region5
  $region4: #{cross_attention_forward.3} parent=0 // pred_region
    _
  $region5: #{cross_attention_forward.3} parent=0 // pred_fallthru
    _
  // Predicated region
  $region6: #{cross_attention_forward.3} parent=0 // pred_check
    _
  $region7: #{cross_attention_forward.3} parent=0 // pred_check_branch
    %10 = sbr.rel (0) target = $region9
  $region8: #{cross_attention_forward.3} parent=0 // pred_region
    _
  $region9: #{cross_attention_forward.3} parent=0 // pred_fallthru
    _
  %p11 = scmp.eq.s32.totalorder 0, 0
  // Predicated region
  $region10: #{cross_attention_forward.3} parent=0 // pred_check
    %p12 = pneg %p11
  $region11: #{cross_attention_forward.3} parent=0 // pred_check_branch
    %14 = sbr.rel (%p12) target = $region13
  $region12: #{cross_attention_forward.3} parent=0 // pred_region
    %vm15 = vcmask 261120
    %16 = vst.msk [vmem:[#allocation2] sm:$0xff] %vm15, 0.0
    %17 = vst.msk [vmem:[#allocation2 + $0x8] sm:$0xff] %vm15, 0.0
  $region13: #{cross_attention_forward.3} parent=0 // pred_fallthru
    _
  %v18 = vld [vmem:[#allocation2] sm:$0xff]
  %v19 = vld [vmem:[#allocation2 + $0x8] sm:$0xff]
  %v20 = vld [vmem:[%s0] sm:$0xff]
  %v21 = vld [vmem:[%s0 + $0x8] sm:$0xff]
  %v22 = vld [vmem:[%s1] sm:$0xff]
  %v23 = vld [vmem:[%s1 + $0x8] sm:$0xff]
  %v24 = vld [vmem:[%s1 + $0x10] sm:$0xff]
  %v25 = vld [vmem:[%s1 + $0x18] sm:$0xff]
  %vm26 = vcmask 261120
  %v28 = vsel %vm26, %v20, 0
  %v31 = vsel %vm26, %v21, 0
  %33 = vmatprep.subr.mxu0 0.0
  %34 = vmatpush1.msra.mxu0 0.0
  %35 = vmatprep.subr.mxu0 0.0
  %36 = vmatpush1.msra.mxu0 0.0
  %37 = vmatprep.subr.mxu0 0.0
  %38 = vmatpush1.msra.mxu0 0.0
  %39 = vmatprep.subr.mxu0 0.0
  %40 = vmatpush1.msra.mxu0 0.0
  %41 = vmatprep.subr.mxu0 0.0
  %42 = vmatpush1.msra.mxu0 0.0
  %43 = vmatprep.subr.mxu0 0.0
  %44 = vmatpush1.msra.mxu0 0.0
  %45 = vmatprep.subr.mxu0 0.0
  %46 = vmatpush1.msra.mxu0 0.0
  %47 = vmatprep.subr.mxu0 0.0
  %48 = vmatpush1.msra.mxu0 0.0
  %49 = vmatprep.subr.mxu0 0.0
  %50 = vmatpush1.msra.mxu0 0.0
  %51 = vmatprep.subr.mxu0 0.0
  %52 = vmatpush1.msra.mxu0 0.0
  %53 = vmatprep.subr.mxu0 0.0
  %54 = vmatpush1.msra.mxu0 0.0
  %55 = vmatprep.subr.mxu0 0.0
  %56 = vmatpush1.msra.mxu0 0.0
  %57 = vmatprep.subr.mxu0 0.0
  %58 = vmatpush1.msra.mxu0 %v25
  %59 = vmatprep.subr.mxu0 0.0
  %60 = vmatpush1.msra.mxu0 %v24
  %61 = vmatprep.subr.mxu0 0.0
  %62 = vmatpush1.msra.mxu0 %v23
  %63 = vmatprep.subr.mxu0 0.0
  %64 = vmatpush1.msra.mxu0 %v22
  %65 = vmatprep.subr.mxu0 0.0
  %66 = vmatpush2.msra.mxu0 0.0
  %67 = vmatprep.subr.mxu0 0.0
  %68 = vmatpush2.msra.mxu0 0.0
  %69 = vmatprep.subr.mxu0 0.0
  %70 = vmatpush2.msra.mxu0 0.0
  %71 = vmatprep.subr.mxu0 0.0
  %72 = vmatpush2.msra.mxu0 0.0
  %73 = vmatprep.subr.mxu0 0.0
  %74 = vmatpush2.msra.mxu0 0.0
  %75 = vmatprep.subr.mxu0 0.0
  %76 = vmatpush2.msra.mxu0 0.0
  %77 = vmatprep.subr.mxu0 0.0
  %78 = vmatpush2.msra.mxu0 0.0
  %79 = vmatprep.subr.mxu0 0.0
  %80 = vmatpush2.msra.mxu0 0.0
  %81 = vmatprep.subr.mxu0 0.0
  %82 = vmatpush2.msra.mxu0 0.0
  %83 = vmatprep.subr.mxu0 0.0
  %84 = vmatpush2.msra.mxu0 0.0
  %85 = vmatprep.subr.mxu0 0.0
  %86 = vmatpush2.msra.mxu0 0.0
  %87 = vmatprep.subr.mxu0 0.0
  %88 = vmatpush2.msra.mxu0 0.0
  %89 = vmatprep.subr.mxu0 0.0
  %90 = vmatpush2.msra.mxu0 0.0
  %91 = vmatprep.subr.mxu0 0.0
  %92 = vmatpush2.msra.mxu0 0.0
  %93 = vmatprep.subr.mxu0 0.0
  %94 = vmatpush2.msra.mxu0 0.0
  %95 = vmatprep.subr.mxu0 0.0
  %96 = vmatpush2.msra.mxu0 0.0
  %97 = vmatprep.mubr.f32.mxu0 0.0
  %98 = vmatmul.mubr.f32.gmra.mxu0 %v28
  %v99 = vpop.f32.mrf.mxu0
  %v100 = vadd.f32 0.0, %v99
  %v101 = vpop.f32.mrf.mxu0
  %102 = vmatprep.mubr.f32.mxu0 0.0
  %103 = vmatmul.mubr.f32.gmra.mxu0 %v31
  %v104 = vpop.f32.mrf.mxu0
  %v105 = vadd.f32 0.0, %v104
  %v106 = vpop.f32.mrf.mxu0
  %107 = vdwg.mxu0
  %v108 = vadd.f32 %v18, %v100
  %v109 = vadd.f32 %v19, %v105
  %110 = vst.msk [vmem:[#allocation2] sm:$0xff] %vm26, %v108
  %111 = vst.msk [vmem:[#allocation2 + $0x8] sm:$0xff] %vm26, %v109
  // Predicated region
  $region14: #{cross_attention_forward.3} parent=0 // pred_check
    %p112 = pneg %p11
  $region15: #{cross_attention_forward.3} parent=0 // pred_check_branch
    %114 = sbr.rel (%p112) target = $region17
  $region16: #{cross_attention_forward.3} parent=0 // pred_region
    %v115 = vld [vmem:[#allocation2] sm:$0xff]
    %v116 = vld [vmem:[#allocation2 + $0x8] sm:$0xff]
    %117 = vst.msk [vmem:[%s2] sm:$0xff] %vm26, %v115
    %118 = vst.msk [vmem:[%s2 + $0x8] sm:$0xff] %vm26, %v116
  $region17: #{cross_attention_forward.3} parent=0 // pred_fallthru
    _
  // Predicated region
  $region18: #{cross_attention_forward.3} parent=0 // pred_check
    _
  $region19: #{cross_attention_forward.3} parent=0 // pred_check_branch
    %120 = sbr.rel (0) target = $region21
  $region20: #{cross_attention_forward.3} parent=0 // pred_region
    _
  $region21: #{cross_attention_forward.3} parent=0 // pred_fallthru
    _
  // Predicated region
  $region22: #{cross_attention_forward.3} parent=0 // pred_check
    _
  $region23: #{cross_attention_forward.3} parent=0 // pred_check_branch
    %122 = sbr.rel (0) target = $region25
  $region24: #{cross_attention_forward.3} parent=0 // pred_region
    _
  $region25: #{cross_attention_forward.3} parent=0 // pred_fallthru
    _

// kernel: cross_attention_forward.4
$region0: #{cross_attention_forward.4}
  #allocation0 [shape = 'u32[]', space=smem, size = 0x4, offset = 0x4, fixed_abs, tag = 'smem constant byte address 0x4 - core index']
  #allocation1 [shape = 'u32[144,128]{1,0:T(1,128)}', space=vmem, size = 0x12000, scoped, tag = 'internal scratch']
  #allocation2 [shape = 'f32[16,64]{1,0:T(8,128)}', space=vmem, size = 0x2000, scoped, tag = 'scratch operand']
  %s0 = inlined_call_operand.vmem [shape: f32[16,32], index: 0, kind: input, shape index: {}]
  %s1 = inlined_call_operand.vmem [shape: f32[32,64], index: 1, kind: input, shape index: {}]
  %s2 = inlined_call_operand.vmem [shape: f32[16,64], index: 2, kind: output, shape index: {}]
  %s3 = sld [smem:[#allocation0]]
  $region26: #{cross_attention_forward.4} parent=0
    _
  %s5 = ssub.s32 1, %s3
  %s6 = scalar_select 0, %s5, %s3
  // Predicated region
  $region2: #{cross_attention_forward.4} parent=0 // pred_check
    _
  $region3: #{cross_attention_forward.4} parent=0 // pred_check_branch
    %8 = sbr.rel (0) target = $region5
  $region4: #{cross_attention_forward.4} parent=0 // pred_region
    _
  $region5: #{cross_attention_forward.4} parent=0 // pred_fallthru
    _
  // Predicated region
  $region6: #{cross_attention_forward.4} parent=0 // pred_check
    _
  $region7: #{cross_attention_forward.4} parent=0 // pred_check_branch
    %10 = sbr.rel (0) target = $region9
  $region8: #{cross_attention_forward.4} parent=0 // pred_region
    _
  $region9: #{cross_attention_forward.4} parent=0 // pred_fallthru
    _
  %p11 = scmp.eq.s32.totalorder 0, 0
  // Predicated region
  $region10: #{cross_attention_forward.4} parent=0 // pred_check
    %p12 = pneg %p11
  $region11: #{cross_attention_forward.4} parent=0 // pred_check_branch
    %14 = sbr.rel (%p12) target = $region13
  $region12: #{cross_attention_forward.4} parent=0 // pred_region
    %vm15 = vcmask 523264
    %16 = vst.msk [vmem:[#allocation2] sm:$0xff] %vm15, 0.0
    %17 = vst.msk [vmem:[#allocation2 + $0x8] sm:$0xff] %vm15, 0.0
  $region13: #{cross_attention_forward.4} parent=0 // pred_fallthru
    _
  %v18 = vld [vmem:[#allocation2] sm:$0xff]
  %v19 = vld [vmem:[#allocation2 + $0x8] sm:$0xff]
  %v20 = vld [vmem:[%s0] sm:$0xff]
  %v21 = vld [vmem:[%s0 + $0x8] sm:$0xff]
  %v22 = vld [vmem:[%s1] sm:$0xff]
  %v23 = vld [vmem:[%s1 + $0x8] sm:$0xff]
  %v24 = vld [vmem:[%s1 + $0x10] sm:$0xff]
  %v25 = vld [vmem:[%s1 + $0x18] sm:$0xff]
  %vm26 = vcmask 261120
  %v28 = vsel %vm26, %v20, 0
  %v31 = vsel %vm26, %v21, 0
  %33 = vmatprep.subr.mxu0 0.0
  %34 = vmatpush1.msra.mxu0 0.0
  %35 = vmatprep.subr.mxu0 0.0
  %36 = vmatpush1.msra.mxu0 0.0
  %37 = vmatprep.subr.mxu0 0.0
  %38 = vmatpush1.msra.mxu0 0.0
  %39 = vmatprep.subr.mxu0 0.0
  %40 = vmatpush1.msra.mxu0 0.0
  %41 = vmatprep.subr.mxu0 0.0
  %42 = vmatpush1.msra.mxu0 0.0
  %43 = vmatprep.subr.mxu0 0.0
  %44 = vmatpush1.msra.mxu0 0.0
  %45 = vmatprep.subr.mxu0 0.0
  %46 = vmatpush1.msra.mxu0 0.0
  %47 = vmatprep.subr.mxu0 0.0
  %48 = vmatpush1.msra.mxu0 0.0
  %49 = vmatprep.subr.mxu0 0.0
  %50 = vmatpush1.msra.mxu0 0.0
  %51 = vmatprep.subr.mxu0 0.0
  %52 = vmatpush1.msra.mxu0 0.0
  %53 = vmatprep.subr.mxu0 0.0
  %54 = vmatpush1.msra.mxu0 0.0
  %55 = vmatprep.subr.mxu0 0.0
  %56 = vmatpush1.msra.mxu0 0.0
  %57 = vmatprep.subr.mxu0 0.0
  %58 = vmatpush1.msra.mxu0 %v25
  %59 = vmatprep.subr.mxu0 0.0
  %60 = vmatpush1.msra.mxu0 %v24
  %61 = vmatprep.subr.mxu0 0.0
  %62 = vmatpush1.msra.mxu0 %v23
  %63 = vmatprep.subr.mxu0 0.0
  %64 = vmatpush1.msra.mxu0 %v22
  %65 = vmatprep.subr.mxu0 0.0
  %66 = vmatpush2.msra.mxu0 0.0
  %67 = vmatprep.subr.mxu0 0.0
  %68 = vmatpush2.msra.mxu0 0.0
  %69 = vmatprep.subr.mxu0 0.0
  %70 = vmatpush2.msra.mxu0 0.0
  %71 = vmatprep.subr.mxu0 0.0
  %72 = vmatpush2.msra.mxu0 0.0
  %73 = vmatprep.subr.mxu0 0.0
  %74 = vmatpush2.msra.mxu0 0.0
  %75 = vmatprep.subr.mxu0 0.0
  %76 = vmatpush2.msra.mxu0 0.0
  %77 = vmatprep.subr.mxu0 0.0
  %78 = vmatpush2.msra.mxu0 0.0
  %79 = vmatprep.subr.mxu0 0.0
  %80 = vmatpush2.msra.mxu0 0.0
  %81 = vmatprep.subr.mxu0 0.0
  %82 = vmatpush2.msra.mxu0 0.0
  %83 = vmatprep.subr.mxu0 0.0
  %84 = vmatpush2.msra.mxu0 0.0
  %85 = vmatprep.subr.mxu0 0.0
  %86 = vmatpush2.msra.mxu0 0.0
  %87 = vmatprep.subr.mxu0 0.0
  %88 = vmatpush2.msra.mxu0 0.0
  %89 = vmatprep.subr.mxu0 0.0
  %90 = vmatpush2.msra.mxu0 0.0
  %91 = vmatprep.subr.mxu0 0.0
  %92 = vmatpush2.msra.mxu0 0.0
  %93 = vmatprep.subr.mxu0 0.0
  %94 = vmatpush2.msra.mxu0 0.0
  %95 = vmatprep.subr.mxu0 0.0
  %96 = vmatpush2.msra.mxu0 0.0
  %97 = vmatprep.mubr.f32.mxu0 0.0
  %98 = vmatmul.mubr.f32.gmra.mxu0 %v28
  %v99 = vpop.f32.mrf.mxu0
  %v100 = vadd.f32 0.0, %v99
  %v101 = vpop.f32.mrf.mxu0
  %102 = vmatprep.mubr.f32.mxu0 0.0
  %103 = vmatmul.mubr.f32.gmra.mxu0 %v31
  %v104 = vpop.f32.mrf.mxu0
  %v105 = vadd.f32 0.0, %v104
  %v106 = vpop.f32.mrf.mxu0
  %107 = vdwg.mxu0
  %v108 = vadd.f32 %v18, %v100
  %v109 = vadd.f32 %v19, %v105
  %vm110 = vcmask 523264
  %111 = vst.msk [vmem:[#allocation2] sm:$0xff] %vm110, %v108
  %112 = vst.msk [vmem:[#allocation2 + $0x8] sm:$0xff] %vm110, %v109
  // Predicated region
  $region14: #{cross_attention_forward.4} parent=0 // pred_check
    %p113 = pneg %p11
  $region15: #{cross_attention_forward.4} parent=0 // pred_check_branch
    %115 = sbr.rel (%p113) target = $region17
  $region16: #{cross_attention_forward.4} parent=0 // pred_region
    %v116 = vld [vmem:[#allocation2] sm:$0xff]
    %v117 = vld [vmem:[#allocation2 + $0x8] sm:$0xff]
    %118 = vst.msk [vmem:[%s2] sm:$0xff] %vm110, %v116
    %119 = vst.msk [vmem:[%s2 + $0x8] sm:$0xff] %vm110, %v117
  $region17: #{cross_attention_forward.4} parent=0 // pred_fallthru
    _
  // Predicated region
  $region18: #{cross_attention_forward.4} parent=0 // pred_check
    _
  $region19: #{cross_attention_forward.4} parent=0 // pred_check_branch
    %121 = sbr.rel (0) target = $region21
  $region20: #{cross_attention_forward.4} parent=0 // pred_region
    _
  $region21: #{cross_attention_forward.4} parent=0 // pred_fallthru
    _
  // Predicated region
  $region22: #{cross_attention_forward.4} parent=0 // pred_check
    _
  $region23: #{cross_attention_forward.4} parent=0 // pred_check_branch
    %123 = sbr.rel (0) target = $region25
  $region24: #{cross_attention_forward.4} parent=0 // pred_region
    _
  $region25: #{cross_attention_forward.4} parent=0 // pred_fallthru
    _

// kernel: cross_attention_forward.5
$region0: #{cross_attention_forward.5}
  #allocation0 [shape = 'u32[]', space=smem, size = 0x4, offset = 0x4, fixed_abs, tag = 'smem constant byte address 0x4 - core index']
  #allocation1 [shape = 'u32[144,128]{1,0:T(1,128)}', space=vmem, size = 0x12000, scoped, tag = 'internal scratch']
  #allocation2 [shape = 'f32[2,8,1]{2,1,0:T(8,128)}', space=vmem, size = 0x2000, scoped, tag = 'scratch operand']
  #allocation3 [shape = 'f32[2,8,1]{2,1,0:T(8,128)}', space=vmem, size = 0x2000, scoped, tag = 'scratch operand']
  #allocation4 [shape = 'f32[2,8,16]{2,1,0:T(8,128)}', space=vmem, size = 0x2000, scoped, tag = 'scratch operand']
  %s0 = inlined_call_operand.vmem [shape: f32[2,8,32], index: 0, kind: input, shape index: {}]
  %s1 = inlined_call_operand.vmem [shape: f32[2,8,64], index: 1, kind: input, shape index: {}]
  %s2 = inlined_call_operand.vmem [shape: f32[32,32], index: 2, kind: input, shape index: {}]
  %s3 = inlined_call_operand.vmem [shape: f32[1,32], index: 3, kind: input, shape index: {}]
  %s4 = inlined_call_operand.hbm [shape: f32[2,8,32], index: 4, kind: output, shape index: {}]
  %s5 = sld [smem:[#allocation0]]
  $region57: #{cross_attention_forward.5} parent=0
    _
  %s7 = ssub.s32 1, %s5
  %s8 = scalar_select 0, %s7, %s5
  $region1: #{cross_attention_forward.5} parent=0
    #allocation5 [shape = 'u8[8192]{0}', space=vmem, size = 0x2000, scoped, tag = 'output window, operand 0']
    #allocation6 [shape = 's32[2]{0}', space=sflag, size = 0x8, scoped, tag = 'scoped memory for cross_attention_forward.5']
    %9 = vsyncpa [#allocation6], 0
    %s10 = scalar_lea.sflag [#allocation6], 1
    %11 = vsyncpa %s10, 0
    loop: start=0, step=1, limit=4
    $region2: #{cross_attention_forward.5} parent=1 // loop_pre_header
      _
    $region3: #{cross_attention_forward.5} parent=1 // loop_header
      %s13 = sphi 0, %s17
      %p14 = scmp.ge.s32.totalorder %s13, 4
      %s20 = sphi 0, %s39
      %s21 = sphi 0, %s35
      %s22 = sphi 0, %s31
      %s23 = sphi 0, %s20
      %s24 = sphi 0, %s21
      %s25 = sphi 0, %s22
      %s26 = sphi 0, %s23
      %s27 = sphi 0, %s24
      %s28 = sphi 0, %s25
      %s44 = sphi 0, %s46
      %s47 = sphi 0, %s44
      %s48 = sphi 0, %s47
      %s64 = sphi 0, %s48
      %s72 = sphi 0, %s74
      %s75 = sphi 0, %s72
      %s76 = sphi 0, %s75
      %s92 = sphi 0, %s76
      %s96 = sphi 0, %s96
      %s98 = sphi 0, %s96
      %s99 = sphi 0, %s98
      %s113 = sphi 0, %s99
      %s117 = sphi 0, %s117
      %s119 = sphi 0, %s117
      %s120 = sphi 0, %s119
      %s134 = sphi 0, %s120
      %s142 = sphi 0, %s144
      %s145 = sphi 0, %s142
      %s146 = sphi 0, %s145
      %s162 = sphi 0, %s146
    $region4: #{cross_attention_forward.5} parent=1 // loop_header_branch
      %16 = sbr.rel (%p14) target = $region8
    $region5: #{cross_attention_forward.5} parent=1 // loop_body
      %s18 = ssub.s32 %s13, 1
      %s19 = ssub.s32 %s13, 2
      %s29 = sadd.s32 1, %s22
      %p30 = scmp.ge.s32.totalorder %s29, 1
      %s31 = scalar_select %p30, 0, %s29
      %s32 = sadd.s32 1, %s21
      %s33 = scalar_select %p30, %s32, %s21
      %p34 = scmp.ge.s32.totalorder %s33, 1
      %s35 = scalar_select %p34, 0, %s33
      %s36 = sadd.s32 1, %s20
      %s37 = scalar_select %p34, %s36, %s20
      %p38 = scmp.ge.s32.totalorder %s37, 2
      %s39 = scalar_select %p38, 0, %s37
      %s40 = ssub.s32 %s20, %s39
      %s41 = ssub.s32 %s21, %s35
      %s42 = sor.u32 %s40, %s41
      %p43 = scmp.eq.s32.totalorder %s42, 0
      %s45 = sadd.s32 %s44, 1
      %s46 = scalar_select %p43, %s44, %s45
      %p49 = pneg %p43
      %p50 = scmp.eq.s32.totalorder %s13, 1
      %p51 = por %p49, %p50
      %p52 = scmp.ne.s32.totalorder %s44, %s47
      %p53 = scmp.eq.s32.totalorder %s13, 0
      %p54 = por %p52, %p53
      %p55 = scmp.ne.s32.totalorder %s44, %s47
      %p56 = scmp.eq.s32.totalorder %s18, 1
      %p57 = por %p55, %p56
      %p58 = scmp.ne.s32.totalorder %s47, %s48
      %p59 = scmp.eq.s32.totalorder %s18, 0
      %p60 = por %p58, %p59
      %p61 = scmp.ne.s32.totalorder %s47, %s48
      %p62 = scmp.eq.s32.totalorder %s19, 1
      %p63 = por %p61, %p62
      %p65 = scmp.ne.s32.totalorder %s48, %s64
      %p66 = scmp.eq.s32.totalorder %s19, 0
      %p67 = por %p65, %p66
      %s68 = ssub.s32 %s20, %s39
      %s69 = ssub.s32 %s22, %s31
      %s70 = sor.u32 %s68, %s69
      %p71 = scmp.eq.s32.totalorder %s70, 0
      %s73 = sadd.s32 %s72, 1
      %s74 = scalar_select %p71, %s72, %s73
      %p77 = pneg %p71
      %p78 = scmp.eq.s32.totalorder %s13, 1
      %p79 = por %p77, %p78
      %p80 = scmp.ne.s32.totalorder %s72, %s75
      %p81 = scmp.eq.s32.totalorder %s13, 0
      %p82 = por %p80, %p81
      %p83 = scmp.ne.s32.totalorder %s72, %s75
      %p84 = scmp.eq.s32.totalorder %s18, 1
      %p85 = por %p83, %p84
      %p86 = scmp.ne.s32.totalorder %s75, %s76
      %p87 = scmp.eq.s32.totalorder %s18, 0
      %p88 = por %p86, %p87
      %p89 = scmp.ne.s32.totalorder %s75, %s76
      %p90 = scmp.eq.s32.totalorder %s19, 1
      %p91 = por %p89, %p90
      %p93 = scmp.ne.s32.totalorder %s76, %s92
      %p94 = scmp.eq.s32.totalorder %s19, 0
      %p95 = por %p93, %p94
      %s97 = sadd.s32 %s96, 1
      %p100 = scmp.eq.s32.totalorder %s13, 1
      %p101 = scmp.ne.s32.totalorder %s96, %s98
      %p102 = scmp.eq.s32.totalorder %s13, 0
      %p103 = por %p101, %p102
      %p104 = scmp.ne.s32.totalorder %s96, %s98
      %p105 = scmp.eq.s32.totalorder %s18, 1
      %p106 = por %p104, %p105
      %p107 = scmp.ne.s32.totalorder %s98, %s99
      %p108 = scmp.eq.s32.totalorder %s18, 0
      %p109 = por %p107, %p108
      %p110 = scmp.ne.s32.totalorder %s98, %s99
      %p111 = scmp.eq.s32.totalorder %s19, 1
      %p112 = por %p110, %p111
      %p114 = scmp.ne.s32.totalorder %s99, %s113
      %p115 = scmp.eq.s32.totalorder %s19, 0
      %p116 = por %p114, %p115
      %s118 = sadd.s32 %s117, 1
      %p121 = scmp.eq.s32.totalorder %s13, 1
      %p122 = scmp.ne.s32.totalorder %s117, %s119
      %p123 = scmp.eq.s32.totalorder %s13, 0
      %p124 = por %p122, %p123
      %p125 = scmp.ne.s32.totalorder %s117, %s119
      %p126 = scmp.eq.s32.totalorder %s18, 1
      %p127 = por %p125, %p126
      %p128 = scmp.ne.s32.totalorder %s119, %s120
      %p129 = scmp.eq.s32.totalorder %s18, 0
      %p130 = por %p128, %p129
      %p131 = scmp.ne.s32.totalorder %s119, %s120
      %p132 = scmp.eq.s32.totalorder %s19, 1
      %p133 = por %p131, %p132
      %p135 = scmp.ne.s32.totalorder %s120, %s134
      %p136 = scmp.eq.s32.totalorder %s19, 0
      %p137 = por %p135, %p136
      %s138 = ssub.s32 %s20, %s39
      %s139 = ssub.s32 %s21, %s35
      %s140 = sor.u32 %s138, %s139
      %p141 = scmp.eq.s32.totalorder %s140, 0
      %s143 = sadd.s32 %s142, 1
      %s144 = scalar_select %p141, %s142, %s143
      %p147 = pneg %p141
      %p148 = scmp.eq.s32.totalorder %s13, 1
      %p149 = por %p147, %p148
      %p150 = scmp.ne.s32.totalorder %s142, %s145
      %p151 = scmp.eq.s32.totalorder %s13, 0
      %p152 = por %p150, %p151
      %p153 = scmp.ne.s32.totalorder %s142, %s145
      %p154 = scmp.eq.s32.totalorder %s18, 1
      %p155 = por %p153, %p154
      %p156 = scmp.ne.s32.totalorder %s145, %s146
      %p157 = scmp.eq.s32.totalorder %s18, 0
      %p158 = por %p156, %p157
      %p159 = scmp.ne.s32.totalorder %s145, %s146
      %p160 = scmp.eq.s32.totalorder %s19, 1
      %p161 = por %p159, %p160
      %p163 = scmp.ne.s32.totalorder %s146, %s162
      %p164 = scmp.eq.s32.totalorder %s19, 0
      %p165 = por %p163, %p164
      %p166 = scmp.le.s32.totalorder 1, %s13
      %p167 = scmp.lt.s32.totalorder %s13, 3
      %p168 = pnand %p166, %p167
      %p169 = pneg %p168
      // Predicated region
      $region9: #{cross_attention_forward.5} parent=5 // pred_check
        _
      $region10: #{cross_attention_forward.5} parent=5 // pred_check_branch
        %171 = sbr.rel (%p168) target = $region12
      $region11: #{cross_attention_forward.5} parent=5 // pred_region
        %s172 = ssub.s32 %s13, 1
        // Predicated region
        $region13: #{cross_attention_forward.5} parent=11 // pred_check
          %p173 = pneg %p109
        $region14: #{cross_attention_forward.5} parent=11 // pred_check_branch
          %175 = sbr.rel (%p173) target = $region16
        $region15: #{cross_attention_forward.5} parent=11 // pred_region
          _
        $region16: #{cross_attention_forward.5} parent=11 // pred_fallthru
          _
        // Predicated region
        $region17: #{cross_attention_forward.5} parent=11 // pred_check
          %p176 = pneg %p130
        $region18: #{cross_attention_forward.5} parent=11 // pred_check_branch
          %178 = sbr.rel (%p176) target = $region20
        $region19: #{cross_attention_forward.5} parent=11 // pred_region
          _
        $region20: #{cross_attention_forward.5} parent=11 // pred_fallthru
          _
      $region12: #{cross_attention_forward.5} parent=5 // pred_fallthru
        _
      %p179 = scmp.lt.s32.totalorder %s13, 2
      // Predicated region
      $region21: #{cross_attention_forward.5} parent=5 // pred_check
        %p180 = pneg %p179
      $region22: #{cross_attention_forward.5} parent=5 // pred_check_branch
        %182 = sbr.rel (%p180) target = $region24
      $region23: #{cross_attention_forward.5} parent=5 // pred_region
        // Predicated region
        $region25: #{cross_attention_forward.5} parent=23 // pred_check
          %p183 = pneg %p54
        $region26: #{cross_attention_forward.5} parent=23 // pred_check_branch
          %185 = sbr.rel (%p183) target = $region28
        $region27: #{cross_attention_forward.5} parent=23 // pred_region
          %p186 = scmp.lt.s32.totalorder %s20, 1
          %s187 = scalar_select %p186, %s20, 1
          %p188 = scmp.lt.s32.totalorder %s21, 0
          %s189 = scalar_select %p188, %s21, 0
          %s190 = sadd.s32 %s189, %s187
          %s191 = smul.addr %s190, 8
          %s192 = scalar_lea.vmem %s0, %s191
        $region28: #{cross_attention_forward.5} parent=23 // pred_fallthru
          _
        // Predicated region
        $region29: #{cross_attention_forward.5} parent=23 // pred_check
          %p193 = pneg %p82
        $region30: #{cross_attention_forward.5} parent=23 // pred_check_branch
          %195 = sbr.rel (%p193) target = $region32
        $region31: #{cross_attention_forward.5} parent=23 // pred_region
          %p196 = scmp.lt.s32.totalorder %s20, 1
          %s197 = scalar_select %p196, %s20, 1
          %p198 = scmp.lt.s32.totalorder %s22, 0
          %s199 = scalar_select %p198, %s22, 0
          %s200 = sadd.s32 %s199, %s197
          %s201 = smul.addr %s200, 8
          %s202 = scalar_lea.vmem %s1, %s201
        $region32: #{cross_attention_forward.5} parent=23 // pred_fallthru
          _
      $region24: #{cross_attention_forward.5} parent=5 // pred_fallthru
        _
      %p203 = scmp.le.s32.totalorder 1, %s13
      %p204 = scmp.lt.s32.totalorder %s13, 3
      %p205 = pnand %p203, %p204
      %p206 = pneg %p205
      // Predicated region
      $region33: #{cross_attention_forward.5} parent=5 // pred_check
        _
      $region34: #{cross_attention_forward.5} parent=5 // pred_check_branch
        %208 = sbr.rel (%p205) target = $region36
      $region35: #{cross_attention_forward.5} parent=5 // pred_region
        %s209 = ssub.s32 %s13, 1
        %p210 = scmp.lt.s32.totalorder %s23, 1
        %s211 = scalar_select %p210, %s23, 1
        %p212 = scmp.lt.s32.totalorder %s24, 0
        %s213 = scalar_select %p212, %s24, 0
        %s214 = sadd.s32 %s213, %s211
        %s215 = smul.addr %s214, 8
        %s216 = scalar_lea.vmem %s0, %s215
        %p217 = pneg %p60
        %p218 = pneg %p57
        %p219 = scmp.lt.s32.totalorder %s23, 1
        %s220 = scalar_select %p219, %s23, 1
        %p221 = scmp.lt.s32.totalorder %s25, 0
        %s222 = scalar_select %p221, %s25, 0
        %s223 = sadd.s32 %s222, %s220
        %s224 = smul.addr %s223, 8
        %s225 = scalar_lea.vmem %s1, %s224
        %p226 = pneg %p88
        %p227 = pneg %p85
        %p228 = pneg %p109
        %p229 = pneg %p106
        %p230 = pneg %p130
        %p231 = pneg %p127
        %p232 = pneg %p158
        %p233 = pneg %p155
        %s234 = sand.u32 %s145, 1
        %s235 = scalar_lea.sflag [#allocation6], %s234
        %s236 = sand.u32 %s145, 1
        %s237 = smul.addr %s236, 8
        %s238 = scalar_lea.vmem [#allocation5], %s237
        %p239 = scmp.lt.s32.totalorder %s23, 1
        %s240 = scalar_select %p239, %s23, 1
        %p241 = scmp.lt.s32.totalorder %s24, 0
        %s242 = scalar_select %p241, %s24, 0
        %s243 = sadd.s32 %s242, %s240
        %s244 = smul.addr %s243, 8
        %s245 = scalar_lea.vmem %s0, %s244
        %p246 = scmp.lt.s32.totalorder %s23, 1
        %s247 = scalar_select %p246, %s23, 1
        %p248 = scmp.lt.s32.totalorder %s25, 0
        %s249 = scalar_select %p248, %s25, 0
        %s250 = sadd.s32 %s249, %s247
        %s251 = smul.addr %s250, 8
        %s252 = scalar_lea.vmem %s1, %s251
        %p253 = scmp.eq.s32.totalorder %s25, 0
        // Predicated region
        $region37: #{cross_attention_forward.5} parent=35 // pred_check
          %p254 = pneg %p253
        $region38: #{cross_attention_forward.5} parent=35 // pred_check_branch
          %256 = sbr.rel (%p254) target = $region40
        $region39: #{cross_attention_forward.5} parent=35 // pred_region
          %vm257 = vcmask 7168
          %258 = vst.msk [vmem:[#allocation2] sm:$0xff] %vm257, -inf
          %259 = vst.msk [vmem:[#allocation2 + $0x8] sm:$0xff] %vm257, -inf
          %260 = vst.msk [vmem:[#allocation3] sm:$0xff] %vm257, 0.0
          %261 = vst.msk [vmem:[#allocation3 + $0x8] sm:$0xff] %vm257, 0.0
          %vm262 = vcmask 130048
          %263 = vst.msk [vmem:[#allocation4] sm:$0xff] %vm262, 0.0
          %264 = vst.msk [vmem:[#allocation4 + $0x8] sm:$0xff] %vm262, 0.0
        $region40: #{cross_attention_forward.5} parent=35 // pred_fallthru
          _
        %v265 = vld [vmem:[%s245] sm:$0xff]
        %v266 = vmul.f32 %v265, 0.25
        %v267 = vld [vmem:[%s252] sm:$0xff]
        %vm268 = vcmask 130048
        %v270 = vsel %vm268, %v266, 0
        %v273 = vsel %vm268, %v267, 0
        %275 = vmatprep.subr.mxu0 0.0
        %276 = vmatpush1.xpose.msra.mxu0 0.0
        %277 = vmatprep.subr.mxu0 0.0
        %278 = vmatpush1.xpose.msra.mxu0 0.0
        %279 = vmatprep.subr.mxu0 0.0
        %280 = vmatpush1.xpose.msra.mxu0 0.0
        %281 = vmatprep.subr.mxu0 0.0
        %282 = vmatpush1.xpose.msra.mxu0 0.0
        %283 = vmatprep.subr.mxu0 0.0
        %284 = vmatpush1.xpose.msra.mxu0 0.0
        %285 = vmatprep.subr.mxu0 0.0
        %286 = vmatpush1.xpose.msra.mxu0 0.0
        %287 = vmatprep.subr.mxu0 0.0
        %288 = vmatpush1.xpose.msra.mxu0 0.0
        %289 = vmatprep.subr.mxu0 0.0
        %290 = vmatpush1.xpose.msra.mxu0 0.0
        %291 = vmatprep.subr.mxu0 0.0
        %292 = vmatpush1.xpose.msra.mxu0 0.0
        %293 = vmatprep.subr.mxu0 0.0
        %294 = vmatpush1.xpose.msra.mxu0 0.0
        %295 = vmatprep.subr.mxu0 0.0
        %296 = vmatpush1.xpose.msra.mxu0 0.0
        %297 = vmatprep.subr.mxu0 0.0
        %298 = vmatpush1.xpose.msra.mxu0 0.0
        %299 = vmatprep.subr.mxu0 0.0
        %300 = vmatpush1.xpose.msra.mxu0 0.0
        %301 = vmatprep.subr.mxu0 0.0
        %302 = vmatpush1.xpose.msra.mxu0 0.0
        %303 = vmatprep.subr.mxu0 0.0
        %304 = vmatpush1.xpose.msra.mxu0 0.0
        %305 = vmatprep.subr.mxu0 0.0
        %306 = vmatpush1.xpose.msra.mxu0 %v273
        %307 = vmatprep.subr.mxu0 0.0
        %308 = vmatpush2.xpose.msra.mxu0 0.0
        %309 = vmatprep.subr.mxu0 0.0
        %310 = vmatpush2.xpose.msra.mxu0 0.0
        %311 = vmatprep.subr.mxu0 0.0
        %312 = vmatpush2.xpose.msra.mxu0 0.0
        %313 = vmatprep.subr.mxu0 0.0
        %314 = vmatpush2.xpose.msra.mxu0 0.0
        %315 = vmatprep.subr.mxu0 0.0
        %316 = vmatpush2.xpose.msra.mxu0 0.0
        %317 = vmatprep.subr.mxu0 0.0
        %318 = vmatpush2.xpose.msra.mxu0 0.0
        %319 = vmatprep.subr.mxu0 0.0
        %320 = vmatpush2.xpose.msra.mxu0 0.0
        %321 = vmatprep.subr.mxu0 0.0
        %322 = vmatpush2.xpose.msra.mxu0 0.0
        %323 = vmatprep.subr.mxu0 0.0
        %324 = vmatpush2.xpose.msra.mxu0 0.0
        %325 = vmatprep.subr.mxu0 0.0
        %326 = vmatpush2.xpose.msra.mxu0 0.0
        %327 = vmatprep.subr.mxu0 0.0
        %328 = vmatpush2.xpose.msra.mxu0 0.0
        %329 = vmatprep.subr.mxu0 0.0
        %330 = vmatpush2.xpose.msra.mxu0 0.0
        %331 = vmatprep.subr.mxu0 0.0
        %332 = vmatpush2.xpose.msra.mxu0 0.0
        %333 = vmatprep.subr.mxu0 0.0
        %334 = vmatpush2.xpose.msra.mxu0 0.0
        %335 = vmatprep.subr.mxu0 0.0
        %336 = vmatpush2.xpose.msra.mxu0 0.0
        %337 = vmatprep.subr.mxu0 0.0
        %338 = vmatpush2.xpose.msra.mxu0 0.0
        %339 = vmatprep.mubr.f32.mxu0 0.0
        %340 = vmatmul.mubr.f32.gmra.mxu0 %v270
        %v341 = vpop.f32.mrf.mxu0
        %v342 = vadd.f32 0.0, %v341
        %v343 = vpop.f32.mrf.mxu0
        %344 = vdwg.mxu0
        %v345 = vld [vmem:[#allocation2] sm:$0xff]
        %vm346 = vcmask 64512
        %v347 = vsel %vm346, %v342, -inf
        %348 = vmax.xlane.f32.xlu0 %v347
        %v349 = vpop.xlane.xlu0 %348
        %v350 = vmax.f32 %v345, %v349
        %v351 = vsub.f32 %v345, %v350
        %v352 = vmul.f32 %v351, 1.442695
        %v353 = vpow.pop %v352
        %355 = vset.pattern.permute.xlu0 0
        %356 = vperm.xlu0 %355, %v350
        %v357 = vpop.permute.xlu0 %356
        %v359 = vsub.f32 %v342, %v357
        %v360 = vmul.f32 %v359, 1.442695
        %v361 = vpow.pop %v360
        %v362 = vld [vmem:[#allocation3] sm:$0xff]
        %v363 = vmul.f32 %v353, %v362
        %v364 = vsel %vm346, %v361, 0.0
        %365 = vadd.xlane.f32.xlu0 %v364
        %v366 = vpop.xlane.xlu0 %365
        %v367 = vadd.f32 %v363, %v366
        %vm368 = vcmask 7168
        %369 = vst.msk [vmem:[#allocation3] sm:$0xff] %vm368, %v367
        %v370 = vld [vmem:[#allocation4] sm:$0xff]
        %372 = vset.pattern.permute.xlu0 0
        %373 = vperm.xlu0 %372, %v353
        %v374 = vpop.permute.xlu0 %373
        %v376 = vmul.f32 %v374, %v370
        %377 = vrot.lane.b32.xlu0 %v267, 96
        %v378 = vpop.permute.xlu0 %377
        %v381 = vsel %vm346, %v361, 0
        %383 = vmatprep.subr.mxu0 0.0
        %384 = vmatpush1.msra.mxu0 0.0
        %385 = vmatprep.subr.mxu0 0.0
        %386 = vmatpush1.msra.mxu0 0.0
        %387 = vmatprep.subr.mxu0 0.0
        %388 = vmatpush1.msra.mxu0 0.0
        %389 = vmatprep.subr.mxu0 0.0
        %390 = vmatpush1.msra.mxu0 0.0
        %391 = vmatprep.subr.mxu0 0.0
        %392 = vmatpush1.msra.mxu0 0.0
        %393 = vmatprep.subr.mxu0 0.0
        %394 = vmatpush1.msra.mxu0 0.0
        %395 = vmatprep.subr.mxu0 0.0
        %396 = vmatpush1.msra.mxu0 0.0
        %397 = vmatprep.subr.mxu0 0.0
        %398 = vmatpush1.msra.mxu0 0.0
        %399 = vmatprep.subr.mxu0 0.0
        %400 = vmatpush1.msra.mxu0 0.0
        %401 = vmatprep.subr.mxu0 0.0
        %402 = vmatpush1.msra.mxu0 0.0
        %403 = vmatprep.subr.mxu0 0.0
        %404 = vmatpush1.msra.mxu0 0.0
        %405 = vmatprep.subr.mxu0 0.0
        %406 = vmatpush1.msra.mxu0 0.0
        %407 = vmatprep.subr.mxu0 0.0
        %408 = vmatpush1.msra.mxu0 0.0
        %409 = vmatprep.subr.mxu0 0.0
        %410 = vmatpush1.msra.mxu0 0.0
        %411 = vmatprep.subr.mxu0 0.0
        %412 = vmatpush1.msra.mxu0 0.0
        %413 = vmatprep.subr.mxu0 0.0
        %414 = vmatpush1.msra.mxu0 %v378
        %415 = vmatprep.subr.mxu0 0.0
        %416 = vmatpush2.msra.mxu0 0.0
        %417 = vmatprep.subr.mxu0 0.0
        %418 = vmatpush2.msra.mxu0 0.0
        %419 = vmatprep.subr.mxu0 0.0
        %420 = vmatpush2.msra.mxu0 0.0
        %421 = vmatprep.subr.mxu0 0.0
        %422 = vmatpush2.msra.mxu0 0.0
        %423 = vmatprep.subr.mxu0 0.0
        %424 = vmatpush2.msra.mxu0 0.0
        %425 = vmatprep.subr.mxu0 0.0
        %426 = vmatpush2.msra.mxu0 0.0
        %427 = vmatprep.subr.mxu0 0.0
        %428 = vmatpush2.msra.mxu0 0.0
        %429 = vmatprep.subr.mxu0 0.0
        %430 = vmatpush2.msra.mxu0 0.0
        %431 = vmatprep.subr.mxu0 0.0
        %432 = vmatpush2.msra.mxu0 0.0
        %433 = vmatprep.subr.mxu0 0.0
        %434 = vmatpush2.msra.mxu0 0.0
        %435 = vmatprep.subr.mxu0 0.0
        %436 = vmatpush2.msra.mxu0 0.0
        %437 = vmatprep.subr.mxu0 0.0
        %438 = vmatpush2.msra.mxu0 0.0
        %439 = vmatprep.subr.mxu0 0.0
        %440 = vmatpush2.msra.mxu0 0.0
        %441 = vmatprep.subr.mxu0 0.0
        %442 = vmatpush2.msra.mxu0 0.0
        %443 = vmatprep.subr.mxu0 0.0
        %444 = vmatpush2.msra.mxu0 0.0
        %445 = vmatprep.subr.mxu0 0.0
        %446 = vmatpush2.msra.mxu0 0.0
        %447 = vmatprep.mubr.f32.mxu0 0.0
        %448 = vmatmul.mubr.f32.gmra.mxu0 %v381
        %v449 = vpop.f32.mrf.mxu0
        %v450 = vadd.f32 0.0, %v449
        %v451 = vpop.f32.mrf.mxu0
        %452 = vdwg.mxu0
        %v453 = vadd.f32 %v376, %v450
        %454 = vst.msk [vmem:[#allocation4] sm:$0xff] %vm268, %v453
        %455 = vst.msk [vmem:[#allocation2] sm:$0xff] %vm368, %v350
        %456 = vrot.lane.b32.xlu0 %v266, 112
        %v457 = vpop.permute.xlu0 %456
        %458 = vrot.lane.b32.xlu0 %v267, 112
        %v459 = vpop.permute.xlu0 %458
        %v460 = vsel %vm268, %v457, 0
        %v462 = vsel %vm268, %v459, 0
        %464 = vmatprep.subr.mxu0 0.0
        %465 = vmatpush1.xpose.msra.mxu0 0.0
        %466 = vmatprep.subr.mxu0 0.0
        %467 = vmatpush1.xpose.msra.mxu0 0.0
        %468 = vmatprep.subr.mxu0 0.0
        %469 = vmatpush1.xpose.msra.mxu0 0.0
        %470 = vmatprep.subr.mxu0 0.0
        %471 = vmatpush1.xpose.msra.mxu0 0.0
        %472 = vmatprep.subr.mxu0 0.0
        %473 = vmatpush1.xpose.msra.mxu0 0.0
        %474 = vmatprep.subr.mxu0 0.0
        %475 = vmatpush1.xpose.msra.mxu0 0.0
        %476 = vmatprep.subr.mxu0 0.0
        %477 = vmatpush1.xpose.msra.mxu0 0.0
        %478 = vmatprep.subr.mxu0 0.0
        %479 = vmatpush1.xpose.msra.mxu0 0.0
        %480 = vmatprep.subr.mxu0 0.0
        %481 = vmatpush1.xpose.msra.mxu0 0.0
        %482 = vmatprep.subr.mxu0 0.0
        %483 = vmatpush1.xpose.msra.mxu0 0.0
        %484 = vmatprep.subr.mxu0 0.0
        %485 = vmatpush1.xpose.msra.mxu0 0.0
        %486 = vmatprep.subr.mxu0 0.0
        %487 = vmatpush1.xpose.msra.mxu0 0.0
        %488 = vmatprep.subr.mxu0 0.0
        %489 = vmatpush1.xpose.msra.mxu0 0.0
        %490 = vmatprep.subr.mxu0 0.0
        %491 = vmatpush1.xpose.msra.mxu0 0.0
        %492 = vmatprep.subr.mxu0 0.0
        %493 = vmatpush1.xpose.msra.mxu0 0.0
        %494 = vmatprep.subr.mxu0 0.0
        %495 = vmatpush1.xpose.msra.mxu0 %v462
        %496 = vmatprep.subr.mxu0 0.0
        %497 = vmatpush2.xpose.msra.mxu0 0.0
        %498 = vmatprep.subr.mxu0 0.0
        %499 = vmatpush2.xpose.msra.mxu0 0.0
        %500 = vmatprep.subr.mxu0 0.0
        %501 = vmatpush2.xpose.msra.mxu0 0.0
        %502 = vmatprep.subr.mxu0 0.0
        %503 = vmatpush2.xpose.msra.mxu0 0.0
        %504 = vmatprep.subr.mxu0 0.0
        %505 = vmatpush2.xpose.msra.mxu0 0.0
        %506 = vmatprep.subr.mxu0 0.0
        %507 = vmatpush2.xpose.msra.mxu0 0.0
        %508 = vmatprep.subr.mxu0 0.0
        %509 = vmatpush2.xpose.msra.mxu0 0.0
        %510 = vmatprep.subr.mxu0 0.0
        %511 = vmatpush2.xpose.msra.mxu0 0.0
        %512 = vmatprep.subr.mxu0 0.0
        %513 = vmatpush2.xpose.msra.mxu0 0.0
        %514 = vmatprep.subr.mxu0 0.0
        %515 = vmatpush2.xpose.msra.mxu0 0.0
        %516 = vmatprep.subr.mxu0 0.0
        %517 = vmatpush2.xpose.msra.mxu0 0.0
        %518 = vmatprep.subr.mxu0 0.0
        %519 = vmatpush2.xpose.msra.mxu0 0.0
        %520 = vmatprep.subr.mxu0 0.0
        %521 = vmatpush2.xpose.msra.mxu0 0.0
        %522 = vmatprep.subr.mxu0 0.0
        %523 = vmatpush2.xpose.msra.mxu0 0.0
        %524 = vmatprep.subr.mxu0 0.0
        %525 = vmatpush2.xpose.msra.mxu0 0.0
        %526 = vmatprep.subr.mxu0 0.0
        %527 = vmatpush2.xpose.msra.mxu0 0.0
        %528 = vmatprep.mubr.f32.mxu0 0.0
        %529 = vmatmul.mubr.f32.gmra.mxu0 %v460
        %v530 = vpop.f32.mrf.mxu0
        %v531 = vadd.f32 0.0, %v530
        %v532 = vpop.f32.mrf.mxu0
        %533 = vdwg.mxu0
        %s534 = scalar_lea.vmem [#allocation2], 8
        %v535 = vld [vmem:[%s534] sm:$0xff]
        %v536 = vsel %vm346, %v531, -inf
        %537 = vmax.xlane.f32.xlu0 %v536
        %v538 = vpop.xlane.xlu0 %537
        %v539 = vmax.f32 %v535, %v538
        %v540 = vsub.f32 %v535, %v539
        %v541 = vmul.f32 %v540, 1.442695
        %v542 = vpow.pop %v541
        %544 = vset.pattern.permute.xlu0 0
        %545 = vperm.xlu0 %544, %v539
        %v546 = vpop.permute.xlu0 %545
        %v548 = vsub.f32 %v531, %v546
        %v549 = vmul.f32 %v548, 1.442695
        %v550 = vpow.pop %v549
        %s551 = scalar_lea.vmem [#allocation3], 8
        %v552 = vld [vmem:[%s551] sm:$0xff]
        %v553 = vmul.f32 %v542, %v552
        %v554 = vsel %vm346, %v550, 0.0
        %555 = vadd.xlane.f32.xlu0 %v554
        %v556 = vpop.xlane.xlu0 %555
        %v557 = vadd.f32 %v553, %v556
        %558 = vst.msk [vmem:[%s551] sm:$0xff] %vm368, %v557
        %s559 = scalar_lea.vmem [#allocation4], 8
        %v560 = vld [vmem:[%s559] sm:$0xff]
        %562 = vset.pattern.permute.xlu0 0
        %563 = vperm.xlu0 %562, %v542
        %v564 = vpop.permute.xlu0 %563
        %v566 = vmul.f32 %v564, %v560
        %567 = vrot.lane.b32.xlu0 %v267, 80
        %v568 = vpop.permute.xlu0 %567
        %v571 = vsel %vm346, %v550, 0
        %573 = vmatprep.subr.mxu0 0.0
        %574 = vmatpush1.msra.mxu0 0.0
        %575 = vmatprep.subr.mxu0 0.0
        %576 = vmatpush1.msra.mxu0 0.0
        %577 = vmatprep.subr.mxu0 0.0
        %578 = vmatpush1.msra.mxu0 0.0
        %579 = vmatprep.subr.mxu0 0.0
        %580 = vmatpush1.msra.mxu0 0.0
        %581 = vmatprep.subr.mxu0 0.0
        %582 = vmatpush1.msra.mxu0 0.0
        %583 = vmatprep.subr.mxu0 0.0
        %584 = vmatpush1.msra.mxu0 0.0
        %585 = vmatprep.subr.mxu0 0.0
        %586 = vmatpush1.msra.mxu0 0.0
        %587 = vmatprep.subr.mxu0 0.0
        %588 = vmatpush1.msra.mxu0 0.0
        %589 = vmatprep.subr.mxu0 0.0
        %590 = vmatpush1.msra.mxu0 0.0
        %591 = vmatprep.subr.mxu0 0.0
        %592 = vmatpush1.msra.mxu0 0.0
        %593 = vmatprep.subr.mxu0 0.0
        %594 = vmatpush1.msra.mxu0 0.0
        %595 = vmatprep.subr.mxu0 0.0
        %596 = vmatpush1.msra.mxu0 0.0
        %597 = vmatprep.subr.mxu0 0.0
        %598 = vmatpush1.msra.mxu0 0.0
        %599 = vmatprep.subr.mxu0 0.0
        %600 = vmatpush1.msra.mxu0 0.0
        %601 = vmatprep.subr.mxu0 0.0
        %602 = vmatpush1.msra.mxu0 0.0
        %603 = vmatprep.subr.mxu0 0.0
        %604 = vmatpush1.msra.mxu0 %v568
        %605 = vmatprep.subr.mxu0 0.0
        %606 = vmatpush2.msra.mxu0 0.0
        %607 = vmatprep.subr.mxu0 0.0
        %608 = vmatpush2.msra.mxu0 0.0
        %609 = vmatprep.subr.mxu0 0.0
        %610 = vmatpush2.msra.mxu0 0.0
        %611 = vmatprep.subr.mxu0 0.0
        %612 = vmatpush2.msra.mxu0 0.0
        %613 = vmatprep.subr.mxu0 0.0
        %614 = vmatpush2.msra.mxu0 0.0
        %615 = vmatprep.subr.mxu0 0.0
        %616 = vmatpush2.msra.mxu0 0.0
        %617 = vmatprep.subr.mxu0 0.0
        %618 = vmatpush2.msra.mxu0 0.0
        %619 = vmatprep.subr.mxu0 0.0
        %620 = vmatpush2.msra.mxu0 0.0
        %621 = vmatprep.subr.mxu0 0.0
        %622 = vmatpush2.msra.mxu0 0.0
        %623 = vmatprep.subr.mxu0 0.0
        %624 = vmatpush2.msra.mxu0 0.0
        %625 = vmatprep.subr.mxu0 0.0
        %626 = vmatpush2.msra.mxu0 0.0
        %627 = vmatprep.subr.mxu0 0.0
        %628 = vmatpush2.msra.mxu0 0.0
        %629 = vmatprep.subr.mxu0 0.0
        %630 = vmatpush2.msra.mxu0 0.0
        %631 = vmatprep.subr.mxu0 0.0
        %632 = vmatpush2.msra.mxu0 0.0
        %633 = vmatprep.subr.mxu0 0.0
        %634 = vmatpush2.msra.mxu0 0.0
        %635 = vmatprep.subr.mxu0 0.0
        %636 = vmatpush2.msra.mxu0 0.0
        %637 = vmatprep.mubr.f32.mxu0 0.0
        %638 = vmatmul.mubr.f32.gmra.mxu0 %v571
        %v639 = vpop.f32.mrf.mxu0
        %v640 = vadd.f32 0.0, %v639
        %v641 = vpop.f32.mrf.mxu0
        %642 = vdwg.mxu0
        %v643 = vadd.f32 %v566, %v640
        %644 = vst.msk [vmem:[%s559] sm:$0xff] %vm268, %v643
        %645 = vst.msk [vmem:[%s534] sm:$0xff] %vm368, %v539
        // Predicated region
        $region41: #{cross_attention_forward.5} parent=35 // pred_check
          %p646 = pneg %p253
        $region42: #{cross_attention_forward.5} parent=35 // pred_check_branch
          %648 = sbr.rel (%p646) target = $region44
        $region43: #{cross_attention_forward.5} parent=35 // pred_region
          %v649 = vld [vmem:[%s3] sm:$0x1]
          %v651 = vlaneseq
          %v652 = vshrl.u32 %v651, 7
          %v653 = vsub.s32 0, %v652
          %v654 = vrot.slane %v649, %v653
          %v656 = vld [vmem:[#allocation4] sm:$0xff]
          %v657 = vld [vmem:[#allocation3] sm:$0xff]
          %v658 = vrcp.pop %v657
          %660 = vset.pattern.permute.xlu0 0
          %661 = vperm.xlu0 %660, %v658
          %v662 = vpop.permute.xlu0 %661
          %v664 = vmul.f32 %v656, %v662
          %v665 = vld [vmem:[%s2] sm:$0xff]
          %v666 = vld [vmem:[%s2 + $0x8] sm:$0xff]
          %v668 = vsel %vm268, %v664, 0
          %670 = vmatprep.subr.mxu0 0.0
          %671 = vmatpush1.msra.mxu0 0.0
          %672 = vmatprep.subr.mxu0 0.0
          %673 = vmatpush1.msra.mxu0 0.0
          %674 = vmatprep.subr.mxu0 0.0
          %675 = vmatpush1.msra.mxu0 0.0
          %676 = vmatprep.subr.mxu0 0.0
          %677 = vmatpush1.msra.mxu0 0.0
          %678 = vmatprep.subr.mxu0 0.0
          %679 = vmatpush1.msra.mxu0 0.0
          %680 = vmatprep.subr.mxu0 0.0
          %681 = vmatpush1.msra.mxu0 0.0
          %682 = vmatprep.subr.mxu0 0.0
          %683 = vmatpush1.msra.mxu0 0.0
          %684 = vmatprep.subr.mxu0 0.0
          %685 = vmatpush1.msra.mxu0 0.0
          %686 = vmatprep.subr.mxu0 0.0
          %687 = vmatpush1.msra.mxu0 0.0
          %688 = vmatprep.subr.mxu0 0.0
          %689 = vmatpush1.msra.mxu0 0.0
          %690 = vmatprep.subr.mxu0 0.0
          %691 = vmatpush1.msra.mxu0 0.0
          %692 = vmatprep.subr.mxu0 0.0
          %693 = vmatpush1.msra.mxu0 0.0
          %694 = vmatprep.subr.mxu0 0.0
          %695 = vmatpush1.msra.mxu0 0.0
          %696 = vmatprep.subr.mxu0 0.0
          %697 = vmatpush1.msra.mxu0 0.0
          %698 = vmatprep.subr.mxu0 0.0
          %699 = vmatpush1.msra.mxu0 %v666
          %700 = vmatprep.subr.mxu0 0.0
          %701 = vmatpush1.msra.mxu0 %v665
          %702 = vmatprep.subr.mxu0 0.0
          %703 = vmatpush2.msra.mxu0 0.0
          %704 = vmatprep.subr.mxu0 0.0
          %705 = vmatpush2.msra.mxu0 0.0
          %706 = vmatprep.subr.mxu0 0.0
          %707 = vmatpush2.msra.mxu0 0.0
          %708 = vmatprep.subr.mxu0 0.0
          %709 = vmatpush2.msra.mxu0 0.0
          %710 = vmatprep.subr.mxu0 0.0
          %711 = vmatpush2.msra.mxu0 0.0
          %712 = vmatprep.subr.mxu0 0.0
          %713 = vmatpush2.msra.mxu0 0.0
          %714 = vmatprep.subr.mxu0 0.0
          %715 = vmatpush2.msra.mxu0 0.0
          %716 = vmatprep.subr.mxu0 0.0
          %717 = vmatpush2.msra.mxu0 0.0
          %718 = vmatprep.subr.mxu0 0.0
          %719 = vmatpush2.msra.mxu0 0.0
          %720 = vmatprep.subr.mxu0 0.0
          %721 = vmatpush2.msra.mxu0 0.0
          %722 = vmatprep.subr.mxu0 0.0
          %723 = vmatpush2.msra.mxu0 0.0
          %724 = vmatprep.subr.mxu0 0.0
          %725 = vmatpush2.msra.mxu0 0.0
          %726 = vmatprep.subr.mxu0 0.0
          %727 = vmatpush2.msra.mxu0 0.0
          %728 = vmatprep.subr.mxu0 0.0
          %729 = vmatpush2.msra.mxu0 0.0
          %730 = vmatprep.subr.mxu0 0.0
          %731 = vmatpush2.msra.mxu0 0.0
          %732 = vmatprep.subr.mxu0 0.0
          %733 = vmatpush2.msra.mxu0 0.0
          %734 = vmatprep.mubr.f32.mxu0 0.0
          %735 = vmatmul.mubr.f32.gmra.mxu0 %v668
          %v736 = vpop.f32.mrf.mxu0
          %v737 = vadd.f32 0.0, %v736
          %v738 = vpop.f32.mrf.mxu0
          %739 = vdwg.mxu0
          %v740 = vadd.f32 %v654, %v737
          %v741 = vld [vmem:[%s559] sm:$0xff]
          %v742 = vld [vmem:[%s551] sm:$0xff]
          %v743 = vrcp.pop %v742
          %745 = vset.pattern.permute.xlu0 0
          %746 = vperm.xlu0 %745, %v743
          %v747 = vpop.permute.xlu0 %746
          %v749 = vmul.f32 %v741, %v747
          %v750 = vld [vmem:[%s2 + $0x10] sm:$0xff]
          %v751 = vld [vmem:[%s2 + $0x18] sm:$0xff]
          %v753 = vsel %vm268, %v749, 0
          %755 = vmatprep.subr.mxu0 0.0
          %756 = vmatpush1.msra.mxu0 0.0
          %757 = vmatprep.subr.mxu0 0.0
          %758 = vmatpush1.msra.mxu0 0.0
          %759 = vmatprep.subr.mxu0 0.0
          %760 = vmatpush1.msra.mxu0 0.0
          %761 = vmatprep.subr.mxu0 0.0
          %762 = vmatpush1.msra.mxu0 0.0
          %763 = vmatprep.subr.mxu0 0.0
          %764 = vmatpush1.msra.mxu0 0.0
          %765 = vmatprep.subr.mxu0 0.0
          %766 = vmatpush1.msra.mxu0 0.0
          %767 = vmatprep.subr.mxu0 0.0
          %768 = vmatpush1.msra.mxu0 0.0
          %769 = vmatprep.subr.mxu0 0.0
          %770 = vmatpush1.msra.mxu0 0.0
          %771 = vmatprep.subr.mxu0 0.0
          %772 = vmatpush1.msra.mxu0 0.0
          %773 = vmatprep.subr.mxu0 0.0
          %774 = vmatpush1.msra.mxu0 0.0
          %775 = vmatprep.subr.mxu0 0.0
          %776 = vmatpush1.msra.mxu0 0.0
          %777 = vmatprep.subr.mxu0 0.0
          %778 = vmatpush1.msra.mxu0 0.0
          %779 = vmatprep.subr.mxu0 0.0
          %780 = vmatpush1.msra.mxu0 0.0
          %781 = vmatprep.subr.mxu0 0.0
          %782 = vmatpush1.msra.mxu0 0.0
          %783 = vmatprep.subr.mxu0 0.0
          %784 = vmatpush1.msra.mxu0 %v751
          %785 = vmatprep.subr.mxu0 0.0
          %786 = vmatpush1.msra.mxu0 %v750
          %787 = vmatprep.subr.mxu0 0.0
          %788 = vmatpush2.msra.mxu0 0.0
          %789 = vmatprep.subr.mxu0 0.0
          %790 = vmatpush2.msra.mxu0 0.0
          %791 = vmatprep.subr.mxu0 0.0
          %792 = vmatpush2.msra.mxu0 0.0
          %793 = vmatprep.subr.mxu0 0.0
          %794 = vmatpush2.msra.mxu0 0.0
          %795 = vmatprep.subr.mxu0 0.0
          %796 = vmatpush2.msra.mxu0 0.0
          %797 = vmatprep.subr.mxu0 0.0
          %798 = vmatpush2.msra.mxu0 0.0
          %799 = vmatprep.subr.mxu0 0.0
          %800 = vmatpush2.msra.mxu0 0.0
          %801 = vmatprep.subr.mxu0 0.0
          %802 = vmatpush2.msra.mxu0 0.0
          %803 = vmatprep.subr.mxu0 0.0
          %804 = vmatpush2.msra.mxu0 0.0
          %805 = vmatprep.subr.mxu0 0.0
          %806 = vmatpush2.msra.mxu0 0.0
          %807 = vmatprep.subr.mxu0 0.0
          %808 = vmatpush2.msra.mxu0 0.0
          %809 = vmatprep.subr.mxu0 0.0
          %810 = vmatpush2.msra.mxu0 0.0
          %811 = vmatprep.subr.mxu0 0.0
          %812 = vmatpush2.msra.mxu0 0.0
          %813 = vmatprep.subr.mxu0 0.0
          %814 = vmatpush2.msra.mxu0 0.0
          %815 = vmatprep.subr.mxu0 0.0
          %816 = vmatpush2.msra.mxu0 0.0
          %817 = vmatprep.subr.mxu0 0.0
          %818 = vmatpush2.msra.mxu0 0.0
          %819 = vmatprep.mubr.f32.mxu0 0.0
          %820 = vmatmul.mubr.f32.gmra.mxu0 %v753
          %v821 = vpop.f32.mrf.mxu0
          %v822 = vadd.f32 0.0, %v821
          %v823 = vpop.f32.mrf.mxu0
          %824 = vdwg.mxu0
          %v825 = vadd.f32 %v740, %v822
          %vm826 = vcmask 261120
          %827 = vst.msk [vmem:[%s238] sm:$0xff] %vm826, %v825
        $region44: #{cross_attention_forward.5} parent=35 // pred_fallthru
          _
        %s828 = sand.u32 %s145, 1
        %s829 = scalar_lea.sflag [#allocation6], %s828
        %s830 = sand.u32 %s145, 1
        %s831 = smul.addr %s830, 8
        %s832 = scalar_lea.vmem [#allocation5], %s831
        // Predicated region
        $region45: #{cross_attention_forward.5} parent=35 // pred_check
          %p833 = pneg %p155
        $region46: #{cross_attention_forward.5} parent=35 // pred_check_branch
          %835 = sbr.rel (%p833) target = $region48
        $region47: #{cross_attention_forward.5} parent=35 // pred_region
          %s837 = ssub.s32 128, 128
          %838 = vsyncadd %s829, %s837
          %s839 = sadd.s32 %s24, %s23
          %s840 = smul.addr %s839, 128
          %s841 = scalar_lea.hbm %s4, %s840
          %s843 = sshll.u32 %s832, 4
          %s844 = int_to_ptr.vmem [resolvable:$true] %s843
          %846 = dma.vmem_to_hbm [thread:$0]  %s844, 128, %s841, %s829
        $region48: #{cross_attention_forward.5} parent=35 // pred_fallthru
          _
      $region36: #{cross_attention_forward.5} parent=5 // pred_fallthru
        _
      %p847 = scmp.le.s32.totalorder 2, %s13
      // Predicated region
      $region49: #{cross_attention_forward.5} parent=5 // pred_check
        %p848 = pneg %p847
      $region50: #{cross_attention_forward.5} parent=5 // pred_check_branch
        %850 = sbr.rel (%p848) target = $region52
      $region51: #{cross_attention_forward.5} parent=5 // pred_region
        %s851 = ssub.s32 %s13, 2
        // Predicated region
        $region53: #{cross_attention_forward.5} parent=51 // pred_check
          %p852 = pneg %p161
        $region54: #{cross_attention_forward.5} parent=51 // pred_check_branch
          %854 = sbr.rel (%p852) target = $region56
        $region55: #{cross_attention_forward.5} parent=51 // pred_region
          %s855 = sand.u32 %s146, 1
          %s856 = scalar_lea.sflag [#allocation6], %s855
          %s857 = sand.u32 %s146, 1
          %s858 = smul.addr %s857, 8
          %s859 = scalar_lea.vmem [#allocation5], %s858
          %860 = dma.done %s856, 128
        $region56: #{cross_attention_forward.5} parent=51 // pred_fallthru
          _
      $region52: #{cross_attention_forward.5} parent=5 // pred_fallthru
        _
    $region6: #{cross_attention_forward.5} parent=1 // loop_footer
      %s17 = sadd.s32 1, %s13
    $region7: #{cross_attention_forward.5} parent=1 // loop_footer_branch
      %12 = sbr.rel target = $region3
    $region8: #{cross_attention_forward.5} parent=1 // loop_exit
      _
    %861 = vsyncpa [#allocation6], 1
    %s862 = scalar_lea.sflag [#allocation6], 1
    %863 = vsyncpa %s862, 1

</llo_original>
